<compile_context>
chip_gen: v5e
topology: v5e:2x2
jax: 0.10.0
libtpu: 0.0.40
codegen_flags: <defaults>
</compile_context>

<pallas_src>
import functools

import jax
import jax.numpy as jnp
from jax.experimental import pallas as pl
from jax.experimental.pallas import tpu as pltpu

K = 5    # Conv1d kernel_size
PAD = 2  # Conv1d padding


def _round_up(x, m):
    return ((x + m - 1) // m) * m


def simple_conv_kernel(x_ref,
                       w1_ref, b1_ref,
                       w2_ref, b2_ref,
                       w3_ref, b3_ref,
                       w4_ref, b4_ref,
                       o_ref,
                       col_ref, act_ref,
                       *, L):
    """x_ref: (C_in_pad, N) f32 lane-dense slab, N = BT*L (samples occupy
    consecutive, L-aligned lane ranges); w*_ref: (C_out, K*C_src) bf16;
    b*_ref: (C_out, 1) f32; o_ref: (C_out_last, N);
    col_ref: (K*C_src_max, N) bf16 scratch; act_ref: (C_mid_max, N) f32 scratch."""
    N = x_ref.shape[1]

    # Per-lane position within its sample; one iota reused by all layers/taps.
    pos = jax.lax.broadcasted_iota(jnp.int32, (1, N), 1) % L

    def conv_relu(src, w_ref, b_ref):
        """src: (C_src, N) f32 slab. Returns (C_out, N) f32 after bias + ReLU."""
        c_src = src.shape[0]
        assert w_ref.shape[1] == K * c_src
        # im2col: K whole-slab lane rolls + halo mask -> K full-width stores.
        for k in range(K):
            d = k - PAD          # col_k[:, l] = src[:, l + d] (zero outside sample)
            if d == 0:
                col_ref[k * c_src:(k + 1) * c_src, :] = src.astype(jnp.bfloat16)
            else:
                shifted = pltpu.roll(src, shift=(-d) % N, axis=1)
                valid = (pos >= -d) & (pos < L - d)       # per-sample halo mask
                col_ref[k * c_src:(k + 1) * c_src, :] = (
                    jnp.where(valid, shifted, 0.0).astype(jnp.bfloat16))
        # One MXU matmul per layer (bf16 x bf16 -> f32 accumulation).
        acc = jnp.dot(w_ref[...], col_ref[0:K * c_src, :],
                      preferred_element_type=jnp.float32)
        # Bias + ReLU in f32 on the VPU.
        return jnp.maximum(acc + b_ref[...], 0.0)

    # Layer 1 reads the input block directly; intermediate activations are
    # staged in the explicit f32 VMEM scratch (full-width ld/st, no spills).
    h = conv_relu(x_ref[...], w1_ref, b1_ref)
    c1 = w1_ref.shape[0]
    act_ref[0:c1, :] = h

    h = conv_relu(act_ref[0:c1, :], w2_ref, b2_ref)
    c2 = w2_ref.shape[0]
    act_ref[0:c2, :] = h

    h = conv_relu(act_ref[0:c2, :], w3_ref, b3_ref)
    c3 = w3_ref.shape[0]
    act_ref[0:c3, :] = h

    h = conv_relu(act_ref[0:c3, :], w4_ref, b4_ref)
    o_ref[...] = h.astype(o_ref.dtype)          # lane-dense, full-width store


def _pick_batch_tile(B, L, max_lanes=8192, min_lanes_per_step=4096):
    """Largest batch tile BT with BT*L a multiple of 128 (lane-dense blocks),
    capped at max_lanes.  Prefer >=2 grid steps (megacore on v7x) only when
    each step still gets >= min_lanes_per_step lanes.  Returns None when no
    aligned divisor exists (caller pads the lane axis instead)."""
    cands = [bt for bt in range(1, B + 1)
             if B % bt == 0 and (bt * L) % 128 == 0 and bt * L <= max_lanes]
    if not cands:
        return None
    multi = [bt for bt in cands if B // bt >= 2 and bt * L >= min_lanes_per_step]
    return max(multi) if multi else max(cands)


def init_params(key, in_channels=8, out_channels=8, dtype=jnp.float32):
    """Deterministic stand-in for init_sequential_weights: scaled normal weights
    (PyTorch Conv1d layout (C_out, C_in, K)) and small random biases."""
    dims = [(in_channels, 16), (16, 32), (32, 16), (16, out_channels)]
    params = []
    for (cin, cout) in dims:
        key, kw, kb = jax.random.split(key, 3)
        fan_in = cin * K
        w = jax.random.normal(kw, (cout, cin, K), dtype) / jnp.sqrt(float(fan_in))
        b = 0.1 * jax.random.normal(kb, (cout,), dtype)
        params.append((w, b))
    return params


def simple_conv_forward(x_ncl, params, batch_tile=None):
    """x_ncl: (B, C_in, L) as PyTorch Conv1d consumes.  Returns (B, C_out, L)."""
    assert len(params) == 4, "SimpleConv has exactly 4 conv layers"
    B, C_in, L = x_ncl.shape
    C_out = params[-1][0].shape[0]
    N_flat = B * L

    # ---- lane tiling ---------------------------------------------------------
    if batch_tile is not None:
        BT = batch_tile
        assert B % BT == 0
        N_tile, n_pad, grid = BT * L, 0, B // BT
    else:
        BT = _pick_batch_tile(B, L)
        if BT is not None:
            N_tile, n_pad, grid = BT * L, 0, B // BT
        else:
            # Fallback: single lane-padded block so every store stays full-width.
            N_tile = _round_up(N_flat, 128)
            n_pad, grid = N_tile - N_flat, 1
    N_total = N_flat + n_pad

    # ---- lane-dense input slab: (B, C, L) -> (C_in_pad, B*L) f32 ------------
    c_in_pad = _round_up(C_in, 16)     # keep bf16 col scratch (16,128)-tile aligned
    x2d = jnp.transpose(x_ncl, (1, 0, 2)).reshape(C_in, N_flat)
    x2d = jnp.pad(x2d, ((0, c_in_pad - C_in), (0, n_pad)))

    # ---- weights (C_out, C_in, K) -> (C_out, K*C_src) bf16; biases (C_out,1) f32
    kernel_inputs = [x2d]
    in_specs = [pl.BlockSpec((c_in_pad, N_tile), lambda i: (0, i))]
    c_src = c_in_pad
    col_rows, act_rows = 0, 0
    for li, (w, b) in enumerate(params):
        co, ci, kk = w.shape
        assert kk == K
        wt = jnp.transpose(w, (0, 2, 1))              # (co, K, ci): row k*C_src+c <-> x[c, l+k-PAD]
        if c_src > ci:                                # zero-pad channels (layer 1 only)
            wt = jnp.pad(wt, ((0, 0), (0, 0), (0, c_src - ci)))
        w2d = wt.reshape(co, K * c_src).astype(jnp.bfloat16)
        bb = b.astype(jnp.float32).reshape(co, 1)
        kernel_inputs += [w2d, bb]
        in_specs += [pl.BlockSpec(w2d.shape, lambda i: (0, 0)),
                     pl.BlockSpec(bb.shape, lambda i: (0, 0))]
        col_rows = max(col_rows, K * c_src)
        if li < 3:
            act_rows = max(act_rows, co)
        c_src = co                                    # next layer consumes exactly co rows

    out2d = pl.pallas_call(
        functools.partial(simple_conv_kernel, L=L),
        out_shape=jax.ShapeDtypeStruct((C_out, N_total), x_ncl.dtype),
        grid=(grid,),
        in_specs=in_specs,
        out_specs=pl.BlockSpec((C_out, N_tile), lambda i: (0, i)),
        scratch_shapes=[pltpu.VMEM((col_rows, N_tile), jnp.bfloat16),
                        pltpu.VMEM((act_rows, N_tile), jnp.float32)],
        compiler_params=pltpu.CompilerParams(dimension_semantics=("parallel",)),
    )(*kernel_inputs)

    # Lane-dense slab (C_out, B*L) -> (B, C_out, L): layout plumbing outside.
    return jnp.transpose(out2d[:, :N_flat].reshape(C_out, B, L), (1, 0, 2))


def ref_forward_f32(x_ncl, params):
    """Independent pure-JAX f32 reference (lax conv) for the semantic check."""
    h = x_ncl
    for (w, b) in params:
        h = jax.lax.conv_general_dilated(
            h, w, window_strides=(1,), padding=((PAD, PAD),),
            dimension_numbers=('NCH', 'OIH', 'NCH'))
        h = jnp.maximum(h + b[None, :, None], 0.0)
    return h


def ref_forward_bf16(x_ncl, params):
    """Reference mirroring the kernel numerics: f32 activations, bf16 matmul
    inputs (weights + im2col columns), f32 accumulation, f32 bias + ReLU."""
    B, _, L = x_ncl.shape
    h = x_ncl.astype(jnp.float32)
    for (w, b) in params:
        co, ci, kk = w.shape
        hp = jnp.pad(h, ((0, 0), (0, 0), (PAD, PAD)))
        cols = jnp.stack([hp[:, :, j:j + L] for j in range(kk)], axis=1)  # (B,K,Ci,L)
        cols = cols.reshape(B, kk * ci, L).astype(jnp.bfloat16)
        w2d = jnp.transpose(w, (0, 2, 1)).reshape(co, kk * ci).astype(jnp.bfloat16)
        y = jnp.einsum('ok,bkl->bol', w2d, cols,
                       preferred_element_type=jnp.float32)
        h = jnp.maximum(y + b.astype(jnp.float32)[None, :, None], 0.0)
    return h


if __name__ == "__main__":
    key = jax.random.PRNGKey(0)
    k_x, k_p = jax.random.split(key)

    B, C_in, C_out, L = 4, 8, 8, 64
    x = jax.random.normal(k_x, (B, C_in, L), jnp.float32)
    params = init_params(k_p, in_channels=C_in, out_channels=C_out)

    out = jax.block_until_ready(simple_conv_forward(x, params))
    assert out.shape == (B, C_out, L)

    # Numerics check against a reference with the same bf16-matmul/f32-accum scheme.
    ref_matched = jax.block_until_ready(ref_forward_bf16(x, params))
    assert jnp.allclose(out, ref_matched, atol=1e-2, rtol=1e-2), \
        "mismatch vs bf16-matched reference"

    # Semantic check against an independent full-f32 lax.conv reference
    # (loose tolerance only accounts for bf16 MXU inputs in the kernel).
    ref_f32 = jax.block_until_ready(ref_forward_f32(x, params))
    assert jnp.allclose(out, ref_f32, atol=1e-1, rtol=1e-1), \
        "mismatch vs f32 conv reference"

    print("KERNEL_OK")
</pallas_src>

<mosaic_0001>
module attributes {stable_mosaic.version = 11 : i64} {
  func.func @simple_conv_kernel(%arg0: i32, %arg1: memref<16x256xf32, #tpu.memory_space<vmem>>, %arg2: memref<16x80xbf16, #tpu.memory_space<vmem>>, %arg3: memref<16x1xf32, #tpu.memory_space<vmem>>, %arg4: memref<32x80xbf16, #tpu.memory_space<vmem>>, %arg5: memref<32x1xf32, #tpu.memory_space<vmem>>, %arg6: memref<16x160xbf16, #tpu.memory_space<vmem>>, %arg7: memref<16x1xf32, #tpu.memory_space<vmem>>, %arg8: memref<8x80xbf16, #tpu.memory_space<vmem>>, %arg9: memref<8x1xf32, #tpu.memory_space<vmem>>, %arg10: memref<8x256xf32, #tpu.memory_space<vmem>>, %arg11: memref<160x256xbf16, #tpu.memory_space<vmem>>, %arg12: memref<32x256xf32, #tpu.memory_space<vmem>>) attributes {dimension_semantics = [#tpu.dimension_semantics<parallel>], iteration_bounds = array<i64: 1>, scalar_prefetch = 0 : i64, scratch_operands = 2 : i64, tpu.core_type = #tpu.core_type<tc>, window_params = [{transform_indices = @transform_0, window_bounds = array<i64: 16, 256>}, {pipeline_mode = #tpu.pipeline_mode<synchronous>, transform_indices = @transform_1, window_bounds = array<i64: 16, 80>}, {pipeline_mode = #tpu.pipeline_mode<synchronous>, transform_indices = @transform_2, window_bounds = array<i64: 16, 1>}, {pipeline_mode = #tpu.pipeline_mode<synchronous>, transform_indices = @transform_3, window_bounds = array<i64: 32, 80>}, {pipeline_mode = #tpu.pipeline_mode<synchronous>, transform_indices = @transform_4, window_bounds = array<i64: 32, 1>}, {pipeline_mode = #tpu.pipeline_mode<synchronous>, transform_indices = @transform_5, window_bounds = array<i64: 16, 160>}, {pipeline_mode = #tpu.pipeline_mode<synchronous>, transform_indices = @transform_6, window_bounds = array<i64: 16, 1>}, {pipeline_mode = #tpu.pipeline_mode<synchronous>, transform_indices = @transform_7, window_bounds = array<i64: 8, 80>}, {pipeline_mode = #tpu.pipeline_mode<synchronous>, transform_indices = @transform_8, window_bounds = array<i64: 8, 1>}, {transform_indices = @transform_9, window_bounds = array<i64: 8, 256>}]} {
    %0 = tpu.iota {dimensions = array<i32: 1>} : vector<1x256xi32>
    %c64_i32 = arith.constant 64 : i32
    %c0_i32 = arith.constant 0 : i32
    %1 = arith.cmpi eq, %c64_i32, %c0_i32 : i32
    %c1_i32 = arith.constant 1 : i32
    %2 = arith.select %1, %c1_i32, %c64_i32 : i32
    %3 = vector.broadcast %2 : i32 to vector<1x256xi32>
    %4 = arith.remsi %0, %3 : vector<1x256xi32>
    %c0_i32_0 = arith.constant 0 : i32
    %5 = vector.broadcast %c0_i32_0 : i32 to vector<1x256xi32>
    %6 = arith.cmpi ne, %4, %5 : vector<1x256xi32>
    %c0_i32_1 = arith.constant 0 : i32
    %7 = vector.broadcast %c0_i32_1 : i32 to vector<1x256xi32>
    %8 = arith.cmpi slt, %4, %7 : vector<1x256xi32>
    %c0_i32_2 = arith.constant 0 : i32
    %9 = arith.cmpi slt, %2, %c0_i32_2 : i32
    %10 = vector.broadcast %9 : i1 to vector<1x256xi1>
    %11 = vector.broadcast %10 : vector<1x256xi1> to vector<1x256xi1>
    %12 = arith.xori %8, %11 : vector<1x256xi1>
    %13 = arith.andi %12, %6 : vector<1x256xi1>
    %14 = vector.broadcast %2 : i32 to vector<1x256xi32>
    %15 = arith.addi %4, %14 : vector<1x256xi32>
    %16 = arith.select %13, %15, %4 : vector<1x256xi1>, vector<1x256xi32>
    %c0 = arith.constant 0 : index
    %c0_3 = arith.constant 0 : index
    %17 = vector.load %arg1[%c0, %c0_3] : memref<16x256xf32, #tpu.memory_space<vmem>>, vector<16x256xf32>
    %c2_i32 = arith.constant 2 : i32
    %18 = tpu.dynamic_rotate %17 by %c2_i32 dim 1 : vector<16x256xf32>, i32 -> vector<16x256xf32>
    %c2_i32_4 = arith.constant 2 : i32
    %19 = vector.broadcast %c2_i32_4 : i32 to vector<1x256xi32>
    %20 = arith.cmpi sge, %16, %19 : vector<1x256xi32>
    %c66_i32 = arith.constant 66 : i32
    %21 = vector.broadcast %c66_i32 : i32 to vector<1x256xi32>
    %22 = arith.cmpi slt, %16, %21 : vector<1x256xi32>
    %23 = arith.andi %20, %22 : vector<1x256xi1>
    %cst = arith.constant 0.000000e+00 : f32
    %24 = vector.shape_cast %23 : vector<1x256xi1> to vector<1x256xi1>
    %25 = vector.broadcast %24 : vector<1x256xi1> to vector<16x256xi1>
    %26 = vector.broadcast %cst : f32 to vector<16x256xf32>
    %27 = arith.select %25, %18, %26 : vector<16x256xi1>, vector<16x256xf32>
    %28 = arith.truncf %27 : vector<16x256xf32> to vector<16x256xbf16>
    %c0_5 = arith.constant 0 : index
    %c0_6 = arith.constant 0 : index
    %29 = vector.load %arg11[%c0_5, %c0_6] : memref<160x256xbf16, #tpu.memory_space<vmem>>, vector<16x256xbf16>
    tpu.vector_store %arg11[%c0_5, %c0_6], %28 {strides = array<i32>} : memref<160x256xbf16, #tpu.memory_space<vmem>>, vector<16x256xbf16>,
    %c1_i32_7 = arith.constant 1 : i32
    %30 = tpu.dynamic_rotate %17 by %c1_i32_7 dim 1 : vector<16x256xf32>, i32 -> vector<16x256xf32>
    %c1_i32_8 = arith.constant 1 : i32
    %31 = vector.broadcast %c1_i32_8 : i32 to vector<1x256xi32>
    %32 = arith.cmpi sge, %16, %31 : vector<1x256xi32>
    %c65_i32 = arith.constant 65 : i32
    %33 = vector.broadcast %c65_i32 : i32 to vector<1x256xi32>
    %34 = arith.cmpi slt, %16, %33 : vector<1x256xi32>
    %35 = arith.andi %32, %34 : vector<1x256xi1>
    %cst_9 = arith.constant 0.000000e+00 : f32
    %36 = vector.shape_cast %35 : vector<1x256xi1> to vector<1x256xi1>
    %37 = vector.broadcast %36 : vector<1x256xi1> to vector<16x256xi1>
    %38 = vector.broadcast %cst_9 : f32 to vector<16x256xf32>
    %39 = arith.select %37, %30, %38 : vector<16x256xi1>, vector<16x256xf32>
    %40 = arith.truncf %39 : vector<16x256xf32> to vector<16x256xbf16>
    %c16 = arith.constant 16 : index
    %c0_10 = arith.constant 0 : index
    %41 = vector.load %arg11[%c16, %c0_10] : memref<160x256xbf16, #tpu.memory_space<vmem>>, vector<16x256xbf16>
    tpu.vector_store %arg11[%c16, %c0_10], %40 {strides = array<i32>} : memref<160x256xbf16, #tpu.memory_space<vmem>>, vector<16x256xbf16>,
    %42 = arith.truncf %17 : vector<16x256xf32> to vector<16x256xbf16>
    %c32 = arith.constant 32 : index
    %c0_11 = arith.constant 0 : index
    %43 = vector.load %arg11[%c32, %c0_11] : memref<160x256xbf16, #tpu.memory_space<vmem>>, vector<16x256xbf16>
    tpu.vector_store %arg11[%c32, %c0_11], %42 {strides = array<i32>} : memref<160x256xbf16, #tpu.memory_space<vmem>>, vector<16x256xbf16>,
    %c255_i32 = arith.constant 255 : i32
    %44 = tpu.dynamic_rotate %17 by %c255_i32 dim 1 : vector<16x256xf32>, i32 -> vector<16x256xf32>
    %c-1_i32 = arith.constant -1 : i32
    %45 = vector.broadcast %c-1_i32 : i32 to vector<1x256xi32>
    %46 = arith.cmpi sge, %16, %45 : vector<1x256xi32>
    %c63_i32 = arith.constant 63 : i32
    %47 = vector.broadcast %c63_i32 : i32 to vector<1x256xi32>
    %48 = arith.cmpi slt, %16, %47 : vector<1x256xi32>
    %49 = arith.andi %46, %48 : vector<1x256xi1>
    %cst_12 = arith.constant 0.000000e+00 : f32
    %50 = vector.shape_cast %49 : vector<1x256xi1> to vector<1x256xi1>
    %51 = vector.broadcast %50 : vector<1x256xi1> to vector<16x256xi1>
    %52 = vector.broadcast %cst_12 : f32 to vector<16x256xf32>
    %53 = arith.select %51, %44, %52 : vector<16x256xi1>, vector<16x256xf32>
    %54 = arith.truncf %53 : vector<16x256xf32> to vector<16x256xbf16>
    %c48 = arith.constant 48 : index
    %c0_13 = arith.constant 0 : index
    %55 = vector.load %arg11[%c48, %c0_13] : memref<160x256xbf16, #tpu.memory_space<vmem>>, vector<16x256xbf16>
    tpu.vector_store %arg11[%c48, %c0_13], %54 {strides = array<i32>} : memref<160x256xbf16, #tpu.memory_space<vmem>>, vector<16x256xbf16>,
    %c254_i32 = arith.constant 254 : i32
    %56 = tpu.dynamic_rotate %17 by %c254_i32 dim 1 : vector<16x256xf32>, i32 -> vector<16x256xf32>
    %c-2_i32 = arith.constant -2 : i32
    %57 = vector.broadcast %c-2_i32 : i32 to vector<1x256xi32>
    %58 = arith.cmpi sge, %16, %57 : vector<1x256xi32>
    %c62_i32 = arith.constant 62 : i32
    %59 = vector.broadcast %c62_i32 : i32 to vector<1x256xi32>
    %60 = arith.cmpi slt, %16, %59 : vector<1x256xi32>
    %61 = arith.andi %58, %60 : vector<1x256xi1>
    %cst_14 = arith.constant 0.000000e+00 : f32
    %62 = vector.shape_cast %61 : vector<1x256xi1> to vector<1x256xi1>
    %63 = vector.broadcast %62 : vector<1x256xi1> to vector<16x256xi1>
    %64 = vector.broadcast %cst_14 : f32 to vector<16x256xf32>
    %65 = arith.select %63, %56, %64 : vector<16x256xi1>, vector<16x256xf32>
    %66 = arith.truncf %65 : vector<16x256xf32> to vector<16x256xbf16>
    %c64 = arith.constant 64 : index
    %c0_15 = arith.constant 0 : index
    %67 = vector.load %arg11[%c64, %c0_15] : memref<160x256xbf16, #tpu.memory_space<vmem>>, vector<16x256xbf16>
    tpu.vector_store %arg11[%c64, %c0_15], %66 {strides = array<i32>} : memref<160x256xbf16, #tpu.memory_space<vmem>>, vector<16x256xbf16>,
    %c0_16 = arith.constant 0 : index
    %c0_17 = arith.constant 0 : index
    %68 = vector.load %arg2[%c0_16, %c0_17] : memref<16x80xbf16, #tpu.memory_space<vmem>>, vector<16x80xbf16>
    %c0_18 = arith.constant 0 : index
    %c0_19 = arith.constant 0 : index
    %69 = vector.load %arg11[%c0_18, %c0_19] : memref<160x256xbf16, #tpu.memory_space<vmem>>, vector<80x256xbf16>
    %cst_20 = arith.constant dense<0.000000e+00> : vector<16x256xf32>
    %70 = tpu.matmul %68, %69, %cst_20 {dimension_numbers = #tpu.dot_dimension_numbers<[1], [0], [0], [1], [0, 0, 1, 1], [], []>} : vector<16x80xbf16>, vector<80x256xbf16>, vector<16x256xf32> -> vector<16x256xf32>
    %c0_21 = arith.constant 0 : index
    %c0_22 = arith.constant 0 : index
    %71 = vector.load %arg3[%c0_21, %c0_22] : memref<16x1xf32, #tpu.memory_space<vmem>>, vector<16x1xf32>
    %72 = vector.broadcast %71 : vector<16x1xf32> to vector<16x256xf32>
    %73 = arith.addf %70, %72 : vector<16x256xf32>
    %cst_23 = arith.constant 0.000000e+00 : f32
    %74 = vector.broadcast %cst_23 : f32 to vector<16x256xf32>
    %75 = arith.maximumf %73, %74 : vector<16x256xf32>
    %c0_24 = arith.constant 0 : index
    %c0_25 = arith.constant 0 : index
    %76 = vector.load %arg12[%c0_24, %c0_25] : memref<32x256xf32, #tpu.memory_space<vmem>>, vector<16x256xf32>
    tpu.vector_store %arg12[%c0_24, %c0_25], %75 {strides = array<i32>} : memref<32x256xf32, #tpu.memory_space<vmem>>, vector<16x256xf32>,
    %c0_26 = arith.constant 0 : index
    %c0_27 = arith.constant 0 : index
    %77 = vector.load %arg12[%c0_26, %c0_27] : memref<32x256xf32, #tpu.memory_space<vmem>>, vector<16x256xf32>
    %c2_i32_28 = arith.constant 2 : i32
    %78 = tpu.dynamic_rotate %77 by %c2_i32_28 dim 1 : vector<16x256xf32>, i32 -> vector<16x256xf32>
    %c2_i32_29 = arith.constant 2 : i32
    %79 = vector.broadcast %c2_i32_29 : i32 to vector<1x256xi32>
    %80 = arith.cmpi sge, %16, %79 : vector<1x256xi32>
    %c66_i32_30 = arith.constant 66 : i32
    %81 = vector.broadcast %c66_i32_30 : i32 to vector<1x256xi32>
    %82 = arith.cmpi slt, %16, %81 : vector<1x256xi32>
    %83 = arith.andi %80, %82 : vector<1x256xi1>
    %cst_31 = arith.constant 0.000000e+00 : f32
    %84 = vector.shape_cast %83 : vector<1x256xi1> to vector<1x256xi1>
    %85 = vector.broadcast %84 : vector<1x256xi1> to vector<16x256xi1>
    %86 = vector.broadcast %cst_31 : f32 to vector<16x256xf32>
    %87 = arith.select %85, %78, %86 : vector<16x256xi1>, vector<16x256xf32>
    %88 = arith.truncf %87 : vector<16x256xf32> to vector<16x256xbf16>
    %c0_32 = arith.constant 0 : index
    %c0_33 = arith.constant 0 : index
    %89 = vector.load %arg11[%c0_32, %c0_33] : memref<160x256xbf16, #tpu.memory_space<vmem>>, vector<16x256xbf16>
    tpu.vector_store %arg11[%c0_32, %c0_33], %88 {strides = array<i32>} : memref<160x256xbf16, #tpu.memory_space<vmem>>, vector<16x256xbf16>,
    %c1_i32_34 = arith.constant 1 : i32
    %90 = tpu.dynamic_rotate %77 by %c1_i32_34 dim 1 : vector<16x256xf32>, i32 -> vector<16x256xf32>
    %c1_i32_35 = arith.constant 1 : i32
    %91 = vector.broadcast %c1_i32_35 : i32 to vector<1x256xi32>
    %92 = arith.cmpi sge, %16, %91 : vector<1x256xi32>
    %c65_i32_36 = arith.constant 65 : i32
    %93 = vector.broadcast %c65_i32_36 : i32 to vector<1x256xi32>
    %94 = arith.cmpi slt, %16, %93 : vector<1x256xi32>
    %95 = arith.andi %92, %94 : vector<1x256xi1>
    %cst_37 = arith.constant 0.000000e+00 : f32
    %96 = vector.shape_cast %95 : vector<1x256xi1> to vector<1x256xi1>
    %97 = vector.broadcast %96 : vector<1x256xi1> to vector<16x256xi1>
    %98 = vector.broadcast %cst_37 : f32 to vector<16x256xf32>
    %99 = arith.select %97, %90, %98 : vector<16x256xi1>, vector<16x256xf32>
    %100 = arith.truncf %99 : vector<16x256xf32> to vector<16x256xbf16>
    %c16_38 = arith.constant 16 : index
    %c0_39 = arith.constant 0 : index
    %101 = vector.load %arg11[%c16_38, %c0_39] : memref<160x256xbf16, #tpu.memory_space<vmem>>, vector<16x256xbf16>
    tpu.vector_store %arg11[%c16_38, %c0_39], %100 {strides = array<i32>} : memref<160x256xbf16, #tpu.memory_space<vmem>>, vector<16x256xbf16>,
    %102 = arith.truncf %77 : vector<16x256xf32> to vector<16x256xbf16>
    %c32_40 = arith.constant 32 : index
    %c0_41 = arith.constant 0 : index
    %103 = vector.load %arg11[%c32_40, %c0_41] : memref<160x256xbf16, #tpu.memory_space<vmem>>, vector<16x256xbf16>
    tpu.vector_store %arg11[%c32_40, %c0_41], %102 {strides = array<i32>} : memref<160x256xbf16, #tpu.memory_space<vmem>>, vector<16x256xbf16>,
    %c255_i32_42 = arith.constant 255 : i32
    %104 = tpu.dynamic_rotate %77 by %c255_i32_42 dim 1 : vector<16x256xf32>, i32 -> vector<16x256xf32>
    %c-1_i32_43 = arith.constant -1 : i32
    %105 = vector.broadcast %c-1_i32_43 : i32 to vector<1x256xi32>
    %106 = arith.cmpi sge, %16, %105 : vector<1x256xi32>
    %c63_i32_44 = arith.constant 63 : i32
    %107 = vector.broadcast %c63_i32_44 : i32 to vector<1x256xi32>
    %108 = arith.cmpi slt, %16, %107 : vector<1x256xi32>
    %109 = arith.andi %106, %108 : vector<1x256xi1>
    %cst_45 = arith.constant 0.000000e+00 : f32
    %110 = vector.shape_cast %109 : vector<1x256xi1> to vector<1x256xi1>
    %111 = vector.broadcast %110 : vector<1x256xi1> to vector<16x256xi1>
    %112 = vector.broadcast %cst_45 : f32 to vector<16x256xf32>
    %113 = arith.select %111, %104, %112 : vector<16x256xi1>, vector<16x256xf32>
    %114 = arith.truncf %113 : vector<16x256xf32> to vector<16x256xbf16>
    %c48_46 = arith.constant 48 : index
    %c0_47 = arith.constant 0 : index
    %115 = vector.load %arg11[%c48_46, %c0_47] : memref<160x256xbf16, #tpu.memory_space<vmem>>, vector<16x256xbf16>
    tpu.vector_store %arg11[%c48_46, %c0_47], %114 {strides = array<i32>} : memref<160x256xbf16, #tpu.memory_space<vmem>>, vector<16x256xbf16>,
    %c254_i32_48 = arith.constant 254 : i32
    %116 = tpu.dynamic_rotate %77 by %c254_i32_48 dim 1 : vector<16x256xf32>, i32 -> vector<16x256xf32>
    %c-2_i32_49 = arith.constant -2 : i32
    %117 = vector.broadcast %c-2_i32_49 : i32 to vector<1x256xi32>
    %118 = arith.cmpi sge, %16, %117 : vector<1x256xi32>
    %c62_i32_50 = arith.constant 62 : i32
    %119 = vector.broadcast %c62_i32_50 : i32 to vector<1x256xi32>
    %120 = arith.cmpi slt, %16, %119 : vector<1x256xi32>
    %121 = arith.andi %118, %120 : vector<1x256xi1>
    %cst_51 = arith.constant 0.000000e+00 : f32
    %122 = vector.shape_cast %121 : vector<1x256xi1> to vector<1x256xi1>
    %123 = vector.broadcast %122 : vector<1x256xi1> to vector<16x256xi1>
    %124 = vector.broadcast %cst_51 : f32 to vector<16x256xf32>
    %125 = arith.select %123, %116, %124 : vector<16x256xi1>, vector<16x256xf32>
    %126 = arith.truncf %125 : vector<16x256xf32> to vector<16x256xbf16>
    %c64_52 = arith.constant 64 : index
    %c0_53 = arith.constant 0 : index
    %127 = vector.load %arg11[%c64_52, %c0_53] : memref<160x256xbf16, #tpu.memory_space<vmem>>, vector<16x256xbf16>
    tpu.vector_store %arg11[%c64_52, %c0_53], %126 {strides = array<i32>} : memref<160x256xbf16, #tpu.memory_space<vmem>>, vector<16x256xbf16>,
    %c0_54 = arith.constant 0 : index
    %c0_55 = arith.constant 0 : index
    %128 = vector.load %arg4[%c0_54, %c0_55] : memref<32x80xbf16, #tpu.memory_space<vmem>>, vector<32x80xbf16>
    %c0_56 = arith.constant 0 : index
    %c0_57 = arith.constant 0 : index
    %129 = vector.load %arg11[%c0_56, %c0_57] : memref<160x256xbf16, #tpu.memory_space<vmem>>, vector<80x256xbf16>
    %cst_58 = arith.constant dense<0.000000e+00> : vector<32x256xf32>
    %130 = tpu.matmul %128, %129, %cst_58 {dimension_numbers = #tpu.dot_dimension_numbers<[1], [0], [0], [1], [0, 0, 1, 1], [], []>} : vector<32x80xbf16>, vector<80x256xbf16>, vector<32x256xf32> -> vector<32x256xf32>
    %c0_59 = arith.constant 0 : index
    %c0_60 = arith.constant 0 : index
    %131 = vector.load %arg5[%c0_59, %c0_60] : memref<32x1xf32, #tpu.memory_space<vmem>>, vector<32x1xf32>
    %132 = vector.broadcast %131 : vector<32x1xf32> to vector<32x256xf32>
    %133 = arith.addf %130, %132 : vector<32x256xf32>
    %cst_61 = arith.constant 0.000000e+00 : f32
    %134 = vector.broadcast %cst_61 : f32 to vector<32x256xf32>
    %135 = arith.maximumf %133, %134 : vector<32x256xf32>
    %c0_62 = arith.constant 0 : index
    %c0_63 = arith.constant 0 : index
    %136 = vector.load %arg12[%c0_62, %c0_63] : memref<32x256xf32, #tpu.memory_space<vmem>>, vector<32x256xf32>
    tpu.vector_store %arg12[%c0_62, %c0_63], %135 {strides = array<i32>} : memref<32x256xf32, #tpu.memory_space<vmem>>, vector<32x256xf32>,
    %c0_64 = arith.constant 0 : index
    %c0_65 = arith.constant 0 : index
    %137 = vector.load %arg12[%c0_64, %c0_65] : memref<32x256xf32, #tpu.memory_space<vmem>>, vector<32x256xf32>
    %c2_i32_66 = arith.constant 2 : i32
    %138 = tpu.dynamic_rotate %137 by %c2_i32_66 dim 1 : vector<32x256xf32>, i32 -> vector<32x256xf32>
    %c2_i32_67 = arith.constant 2 : i32
    %139 = vector.broadcast %c2_i32_67 : i32 to vector<1x256xi32>
    %140 = arith.cmpi sge, %16, %139 : vector<1x256xi32>
    %c66_i32_68 = arith.constant 66 : i32
    %141 = vector.broadcast %c66_i32_68 : i32 to vector<1x256xi32>
    %142 = arith.cmpi slt, %16, %141 : vector<1x256xi32>
    %143 = arith.andi %140, %142 : vector<1x256xi1>
    %cst_69 = arith.constant 0.000000e+00 : f32
    %144 = vector.shape_cast %143 : vector<1x256xi1> to vector<1x256xi1>
    %145 = vector.broadcast %144 : vector<1x256xi1> to vector<32x256xi1>
    %146 = vector.broadcast %cst_69 : f32 to vector<32x256xf32>
    %147 = arith.select %145, %138, %146 : vector<32x256xi1>, vector<32x256xf32>
    %148 = arith.truncf %147 : vector<32x256xf32> to vector<32x256xbf16>
    %c0_70 = arith.constant 0 : index
    %c0_71 = arith.constant 0 : index
    %149 = vector.load %arg11[%c0_70, %c0_71] : memref<160x256xbf16, #tpu.memory_space<vmem>>, vector<32x256xbf16>
    tpu.vector_store %arg11[%c0_70, %c0_71], %148 {strides = array<i32>} : memref<160x256xbf16, #tpu.memory_space<vmem>>, vector<32x256xbf16>,
    %c1_i32_72 = arith.constant 1 : i32
    %150 = tpu.dynamic_rotate %137 by %c1_i32_72 dim 1 : vector<32x256xf32>, i32 -> vector<32x256xf32>
    %c1_i32_73 = arith.constant 1 : i32
    %151 = vector.broadcast %c1_i32_73 : i32 to vector<1x256xi32>
    %152 = arith.cmpi sge, %16, %151 : vector<1x256xi32>
    %c65_i32_74 = arith.constant 65 : i32
    %153 = vector.broadcast %c65_i32_74 : i32 to vector<1x256xi32>
    %154 = arith.cmpi slt, %16, %153 : vector<1x256xi32>
    %155 = arith.andi %152, %154 : vector<1x256xi1>
    %cst_75 = arith.constant 0.000000e+00 : f32
    %156 = vector.shape_cast %155 : vector<1x256xi1> to vector<1x256xi1>
    %157 = vector.broadcast %156 : vector<1x256xi1> to vector<32x256xi1>
    %158 = vector.broadcast %cst_75 : f32 to vector<32x256xf32>
    %159 = arith.select %157, %150, %158 : vector<32x256xi1>, vector<32x256xf32>
    %160 = arith.truncf %159 : vector<32x256xf32> to vector<32x256xbf16>
    %c32_76 = arith.constant 32 : index
    %c0_77 = arith.constant 0 : index
    %161 = vector.load %arg11[%c32_76, %c0_77] : memref<160x256xbf16, #tpu.memory_space<vmem>>, vector<32x256xbf16>
    tpu.vector_store %arg11[%c32_76, %c0_77], %160 {strides = array<i32>} : memref<160x256xbf16, #tpu.memory_space<vmem>>, vector<32x256xbf16>,
    %162 = arith.truncf %137 : vector<32x256xf32> to vector<32x256xbf16>
    %c64_78 = arith.constant 64 : index
    %c0_79 = arith.constant 0 : index
    %163 = vector.load %arg11[%c64_78, %c0_79] : memref<160x256xbf16, #tpu.memory_space<vmem>>, vector<32x256xbf16>
    tpu.vector_store %arg11[%c64_78, %c0_79], %162 {strides = array<i32>} : memref<160x256xbf16, #tpu.memory_space<vmem>>, vector<32x256xbf16>,
    %c255_i32_80 = arith.constant 255 : i32
    %164 = tpu.dynamic_rotate %137 by %c255_i32_80 dim 1 : vector<32x256xf32>, i32 -> vector<32x256xf32>
    %c-1_i32_81 = arith.constant -1 : i32
    %165 = vector.broadcast %c-1_i32_81 : i32 to vector<1x256xi32>
    %166 = arith.cmpi sge, %16, %165 : vector<1x256xi32>
    %c63_i32_82 = arith.constant 63 : i32
    %167 = vector.broadcast %c63_i32_82 : i32 to vector<1x256xi32>
    %168 = arith.cmpi slt, %16, %167 : vector<1x256xi32>
    %169 = arith.andi %166, %168 : vector<1x256xi1>
    %cst_83 = arith.constant 0.000000e+00 : f32
    %170 = vector.shape_cast %169 : vector<1x256xi1> to vector<1x256xi1>
    %171 = vector.broadcast %170 : vector<1x256xi1> to vector<32x256xi1>
    %172 = vector.broadcast %cst_83 : f32 to vector<32x256xf32>
    %173 = arith.select %171, %164, %172 : vector<32x256xi1>, vector<32x256xf32>
    %174 = arith.truncf %173 : vector<32x256xf32> to vector<32x256xbf16>
    %c96 = arith.constant 96 : index
    %c0_84 = arith.constant 0 : index
    %175 = vector.load %arg11[%c96, %c0_84] : memref<160x256xbf16, #tpu.memory_space<vmem>>, vector<32x256xbf16>
    tpu.vector_store %arg11[%c96, %c0_84], %174 {strides = array<i32>} : memref<160x256xbf16, #tpu.memory_space<vmem>>, vector<32x256xbf16>,
    %c254_i32_85 = arith.constant 254 : i32
    %176 = tpu.dynamic_rotate %137 by %c254_i32_85 dim 1 : vector<32x256xf32>, i32 -> vector<32x256xf32>
    %c-2_i32_86 = arith.constant -2 : i32
    %177 = vector.broadcast %c-2_i32_86 : i32 to vector<1x256xi32>
    %178 = arith.cmpi sge, %16, %177 : vector<1x256xi32>
    %c62_i32_87 = arith.constant 62 : i32
    %179 = vector.broadcast %c62_i32_87 : i32 to vector<1x256xi32>
    %180 = arith.cmpi slt, %16, %179 : vector<1x256xi32>
    %181 = arith.andi %178, %180 : vector<1x256xi1>
    %cst_88 = arith.constant 0.000000e+00 : f32
    %182 = vector.shape_cast %181 : vector<1x256xi1> to vector<1x256xi1>
    %183 = vector.broadcast %182 : vector<1x256xi1> to vector<32x256xi1>
    %184 = vector.broadcast %cst_88 : f32 to vector<32x256xf32>
    %185 = arith.select %183, %176, %184 : vector<32x256xi1>, vector<32x256xf32>
    %186 = arith.truncf %185 : vector<32x256xf32> to vector<32x256xbf16>
    %c128 = arith.constant 128 : index
    %c0_89 = arith.constant 0 : index
    %187 = vector.load %arg11[%c128, %c0_89] : memref<160x256xbf16, #tpu.memory_space<vmem>>, vector<32x256xbf16>
    tpu.vector_store %arg11[%c128, %c0_89], %186 {strides = array<i32>} : memref<160x256xbf16, #tpu.memory_space<vmem>>, vector<32x256xbf16>,
    %c0_90 = arith.constant 0 : index
    %c0_91 = arith.constant 0 : index
    %188 = vector.load %arg6[%c0_90, %c0_91] : memref<16x160xbf16, #tpu.memory_space<vmem>>, vector<16x160xbf16>
    %c0_92 = arith.constant 0 : index
    %c0_93 = arith.constant 0 : index
    %189 = vector.load %arg11[%c0_92, %c0_93] : memref<160x256xbf16, #tpu.memory_space<vmem>>, vector<160x256xbf16>
    %cst_94 = arith.constant dense<0.000000e+00> : vector<16x256xf32>
    %190 = tpu.matmul %188, %189, %cst_94 {dimension_numbers = #tpu.dot_dimension_numbers<[1], [0], [0], [1], [0, 0, 1, 1], [], []>} : vector<16x160xbf16>, vector<160x256xbf16>, vector<16x256xf32> -> vector<16x256xf32>
    %c0_95 = arith.constant 0 : index
    %c0_96 = arith.constant 0 : index
    %191 = vector.load %arg7[%c0_95, %c0_96] : memref<16x1xf32, #tpu.memory_space<vmem>>, vector<16x1xf32>
    %192 = vector.broadcast %191 : vector<16x1xf32> to vector<16x256xf32>
    %193 = arith.addf %190, %192 : vector<16x256xf32>
    %cst_97 = arith.constant 0.000000e+00 : f32
    %194 = vector.broadcast %cst_97 : f32 to vector<16x256xf32>
    %195 = arith.maximumf %193, %194 : vector<16x256xf32>
    %c0_98 = arith.constant 0 : index
    %c0_99 = arith.constant 0 : index
    %196 = vector.load %arg12[%c0_98, %c0_99] : memref<32x256xf32, #tpu.memory_space<vmem>>, vector<16x256xf32>
    tpu.vector_store %arg12[%c0_98, %c0_99], %195 {strides = array<i32>} : memref<32x256xf32, #tpu.memory_space<vmem>>, vector<16x256xf32>,
    %c0_100 = arith.constant 0 : index
    %c0_101 = arith.constant 0 : index
    %197 = vector.load %arg12[%c0_100, %c0_101] : memref<32x256xf32, #tpu.memory_space<vmem>>, vector<16x256xf32>
    %c2_i32_102 = arith.constant 2 : i32
    %198 = tpu.dynamic_rotate %197 by %c2_i32_102 dim 1 : vector<16x256xf32>, i32 -> vector<16x256xf32>
    %c2_i32_103 = arith.constant 2 : i32
    %199 = vector.broadcast %c2_i32_103 : i32 to vector<1x256xi32>
    %200 = arith.cmpi sge, %16, %199 : vector<1x256xi32>
    %c66_i32_104 = arith.constant 66 : i32
    %201 = vector.broadcast %c66_i32_104 : i32 to vector<1x256xi32>
    %202 = arith.cmpi slt, %16, %201 : vector<1x256xi32>
    %203 = arith.andi %200, %202 : vector<1x256xi1>
    %cst_105 = arith.constant 0.000000e+00 : f32
    %204 = vector.shape_cast %203 : vector<1x256xi1> to vector<1x256xi1>
    %205 = vector.broadcast %204 : vector<1x256xi1> to vector<16x256xi1>
    %206 = vector.broadcast %cst_105 : f32 to vector<16x256xf32>
    %207 = arith.select %205, %198, %206 : vector<16x256xi1>, vector<16x256xf32>
    %208 = arith.truncf %207 : vector<16x256xf32> to vector<16x256xbf16>
    %c0_106 = arith.constant 0 : index
    %c0_107 = arith.constant 0 : index
    %209 = vector.load %arg11[%c0_106, %c0_107] : memref<160x256xbf16, #tpu.memory_space<vmem>>, vector<16x256xbf16>
    tpu.vector_store %arg11[%c0_106, %c0_107], %208 {strides = array<i32>} : memref<160x256xbf16, #tpu.memory_space<vmem>>, vector<16x256xbf16>,
    %c1_i32_108 = arith.constant 1 : i32
    %210 = tpu.dynamic_rotate %197 by %c1_i32_108 dim 1 : vector<16x256xf32>, i32 -> vector<16x256xf32>
    %c1_i32_109 = arith.constant 1 : i32
    %211 = vector.broadcast %c1_i32_109 : i32 to vector<1x256xi32>
    %212 = arith.cmpi sge, %16, %211 : vector<1x256xi32>
    %c65_i32_110 = arith.constant 65 : i32
    %213 = vector.broadcast %c65_i32_110 : i32 to vector<1x256xi32>
    %214 = arith.cmpi slt, %16, %213 : vector<1x256xi32>
    %215 = arith.andi %212, %214 : vector<1x256xi1>
    %cst_111 = arith.constant 0.000000e+00 : f32
    %216 = vector.shape_cast %215 : vector<1x256xi1> to vector<1x256xi1>
    %217 = vector.broadcast %216 : vector<1x256xi1> to vector<16x256xi1>
    %218 = vector.broadcast %cst_111 : f32 to vector<16x256xf32>
    %219 = arith.select %217, %210, %218 : vector<16x256xi1>, vector<16x256xf32>
    %220 = arith.truncf %219 : vector<16x256xf32> to vector<16x256xbf16>
    %c16_112 = arith.constant 16 : index
    %c0_113 = arith.constant 0 : index
    %221 = vector.load %arg11[%c16_112, %c0_113] : memref<160x256xbf16, #tpu.memory_space<vmem>>, vector<16x256xbf16>
    tpu.vector_store %arg11[%c16_112, %c0_113], %220 {strides = array<i32>} : memref<160x256xbf16, #tpu.memory_space<vmem>>, vector<16x256xbf16>,
    %222 = arith.truncf %197 : vector<16x256xf32> to vector<16x256xbf16>
    %c32_114 = arith.constant 32 : index
    %c0_115 = arith.constant 0 : index
    %223 = vector.load %arg11[%c32_114, %c0_115] : memref<160x256xbf16, #tpu.memory_space<vmem>>, vector<16x256xbf16>
    tpu.vector_store %arg11[%c32_114, %c0_115], %222 {strides = array<i32>} : memref<160x256xbf16, #tpu.memory_space<vmem>>, vector<16x256xbf16>,
    %c255_i32_116 = arith.constant 255 : i32
    %224 = tpu.dynamic_rotate %197 by %c255_i32_116 dim 1 : vector<16x256xf32>, i32 -> vector<16x256xf32>
    %c-1_i32_117 = arith.constant -1 : i32
    %225 = vector.broadcast %c-1_i32_117 : i32 to vector<1x256xi32>
    %226 = arith.cmpi sge, %16, %225 : vector<1x256xi32>
    %c63_i32_118 = arith.constant 63 : i32
    %227 = vector.broadcast %c63_i32_118 : i32 to vector<1x256xi32>
    %228 = arith.cmpi slt, %16, %227 : vector<1x256xi32>
    %229 = arith.andi %226, %228 : vector<1x256xi1>
    %cst_119 = arith.constant 0.000000e+00 : f32
    %230 = vector.shape_cast %229 : vector<1x256xi1> to vector<1x256xi1>
    %231 = vector.broadcast %230 : vector<1x256xi1> to vector<16x256xi1>
    %232 = vector.broadcast %cst_119 : f32 to vector<16x256xf32>
    %233 = arith.select %231, %224, %232 : vector<16x256xi1>, vector<16x256xf32>
    %234 = arith.truncf %233 : vector<16x256xf32> to vector<16x256xbf16>
    %c48_120 = arith.constant 48 : index
    %c0_121 = arith.constant 0 : index
    %235 = vector.load %arg11[%c48_120, %c0_121] : memref<160x256xbf16, #tpu.memory_space<vmem>>, vector<16x256xbf16>
    tpu.vector_store %arg11[%c48_120, %c0_121], %234 {strides = array<i32>} : memref<160x256xbf16, #tpu.memory_space<vmem>>, vector<16x256xbf16>,
    %c254_i32_122 = arith.constant 254 : i32
    %236 = tpu.dynamic_rotate %197 by %c254_i32_122 dim 1 : vector<16x256xf32>, i32 -> vector<16x256xf32>
    %c-2_i32_123 = arith.constant -2 : i32
    %237 = vector.broadcast %c-2_i32_123 : i32 to vector<1x256xi32>
    %238 = arith.cmpi sge, %16, %237 : vector<1x256xi32>
    %c62_i32_124 = arith.constant 62 : i32
    %239 = vector.broadcast %c62_i32_124 : i32 to vector<1x256xi32>
    %240 = arith.cmpi slt, %16, %239 : vector<1x256xi32>
    %241 = arith.andi %238, %240 : vector<1x256xi1>
    %cst_125 = arith.constant 0.000000e+00 : f32
    %242 = vector.shape_cast %241 : vector<1x256xi1> to vector<1x256xi1>
    %243 = vector.broadcast %242 : vector<1x256xi1> to vector<16x256xi1>
    %244 = vector.broadcast %cst_125 : f32 to vector<16x256xf32>
    %245 = arith.select %243, %236, %244 : vector<16x256xi1>, vector<16x256xf32>
    %246 = arith.truncf %245 : vector<16x256xf32> to vector<16x256xbf16>
    %c64_126 = arith.constant 64 : index
    %c0_127 = arith.constant 0 : index
    %247 = vector.load %arg11[%c64_126, %c0_127] : memref<160x256xbf16, #tpu.memory_space<vmem>>, vector<16x256xbf16>
    tpu.vector_store %arg11[%c64_126, %c0_127], %246 {strides = array<i32>} : memref<160x256xbf16, #tpu.memory_space<vmem>>, vector<16x256xbf16>,
    %c0_128 = arith.constant 0 : index
    %c0_129 = arith.constant 0 : index
    %248 = vector.load %arg8[%c0_128, %c0_129] : memref<8x80xbf16, #tpu.memory_space<vmem>>, vector<8x80xbf16>
    %c0_130 = arith.constant 0 : index
    %c0_131 = arith.constant 0 : index
    %249 = vector.load %arg11[%c0_130, %c0_131] : memref<160x256xbf16, #tpu.memory_space<vmem>>, vector<80x256xbf16>
    %cst_132 = arith.constant dense<0.000000e+00> : vector<8x256xf32>
    %250 = tpu.matmul %248, %249, %cst_132 {dimension_numbers = #tpu.dot_dimension_numbers<[1], [0], [0], [1], [0, 0, 1, 1], [], []>} : vector<8x80xbf16>, vector<80x256xbf16>, vector<8x256xf32> -> vector<8x256xf32>
    %c0_133 = arith.constant 0 : index
    %c0_134 = arith.constant 0 : index
    %251 = vector.load %arg9[%c0_133, %c0_134] : memref<8x1xf32, #tpu.memory_space<vmem>>, vector<8x1xf32>
    %252 = vector.broadcast %251 : vector<8x1xf32> to vector<8x256xf32>
    %253 = arith.addf %250, %252 : vector<8x256xf32>
    %cst_135 = arith.constant 0.000000e+00 : f32
    %254 = vector.broadcast %cst_135 : f32 to vector<8x256xf32>
    %255 = arith.maximumf %253, %254 : vector<8x256xf32>
    %c0_136 = arith.constant 0 : index
    %c0_137 = arith.constant 0 : index
    %256 = vector.load %arg10[%c0_136, %c0_137] : memref<8x256xf32, #tpu.memory_space<vmem>>, vector<8x256xf32>
    tpu.vector_store %arg10[%c0_136, %c0_137], %255 {strides = array<i32>} : memref<8x256xf32, #tpu.memory_space<vmem>>, vector<8x256xf32>,
    return
  }
  func.func @transform_0(%arg0: i32) -> (i32, i32) {
    %c0_i32 = arith.constant 0 : i32
    %c0_i32_0 = arith.constant 0 : i32
    return %c0_i32, %arg0 : i32, i32
  }
  func.func @transform_1(%arg0: i32) -> (i32, i32) {
    %c0_i32 = arith.constant 0 : i32
    %c0_i32_0 = arith.constant 0 : i32
    %c0_i32_1 = arith.constant 0 : i32
    return %c0_i32, %c0_i32_0 : i32, i32
  }
  func.func @transform_2(%arg0: i32) -> (i32, i32) {
    %c0_i32 = arith.constant 0 : i32
    %c0_i32_0 = arith.constant 0 : i32
    %c0_i32_1 = arith.constant 0 : i32
    return %c0_i32, %c0_i32_0 : i32, i32
  }
  func.func @transform_3(%arg0: i32) -> (i32, i32) {
    %c0_i32 = arith.constant 0 : i32
    %c0_i32_0 = arith.constant 0 : i32
    %c0_i32_1 = arith.constant 0 : i32
    return %c0_i32, %c0_i32_0 : i32, i32
  }
  func.func @transform_4(%arg0: i32) -> (i32, i32) {
    %c0_i32 = arith.constant 0 : i32
    %c0_i32_0 = arith.constant 0 : i32
    %c0_i32_1 = arith.constant 0 : i32
    return %c0_i32, %c0_i32_0 : i32, i32
  }
  func.func @transform_5(%arg0: i32) -> (i32, i32) {
    %c0_i32 = arith.constant 0 : i32
    %c0_i32_0 = arith.constant 0 : i32
    %c0_i32_1 = arith.constant 0 : i32
    return %c0_i32, %c0_i32_0 : i32, i32
  }
  func.func @transform_6(%arg0: i32) -> (i32, i32) {
    %c0_i32 = arith.constant 0 : i32
    %c0_i32_0 = arith.constant 0 : i32
    %c0_i32_1 = arith.constant 0 : i32
    return %c0_i32, %c0_i32_0 : i32, i32
  }
  func.func @transform_7(%arg0: i32) -> (i32, i32) {
    %c0_i32 = arith.constant 0 : i32
    %c0_i32_0 = arith.constant 0 : i32
    %c0_i32_1 = arith.constant 0 : i32
    return %c0_i32, %c0_i32_0 : i32, i32
  }
  func.func @transform_8(%arg0: i32) -> (i32, i32) {
    %c0_i32 = arith.constant 0 : i32
    %c0_i32_0 = arith.constant 0 : i32
    %c0_i32_1 = arith.constant 0 : i32
    return %c0_i32, %c0_i32_0 : i32, i32
  }
  func.func @transform_9(%arg0: i32) -> (i32, i32) {
    %c0_i32 = arith.constant 0 : i32
    %c0_i32_0 = arith.constant 0 : i32
    return %c0_i32, %arg0 : i32, i32
  }
}

</mosaic_0001>

<llo_original>
// kernel: tpu_custom_call.1
$region0: #{tpu_custom_call.1}
  #allocation0 [shape = 'u32[]', space=smem, size = 0x4, offset = 0x4, fixed_abs, tag = 'smem constant byte address 0x4 - core index']
  #allocation1 [shape = 'u32[72,128]{1,0:T(1,128)}', space=vmem, size = 0x9000, scoped, tag = 'internal scratch']
  #allocation2 [shape = 'bf16[160,256]{1,0:T(8,128)(2,1)}', space=vmem, size = 0x14000, scoped, tag = 'scratch operand']
  #allocation3 [shape = 'f32[32,256]{1,0:T(8,128)}', space=vmem, size = 0x8000, scoped, tag = 'scratch operand']
  %s0 = inlined_call_operand.vmem [shape: f32[16,256], index: 0, kind: input, shape index: {}]
  %s1 = inlined_call_operand.vmem [shape: bf16[16,80], index: 1, kind: input, shape index: {}]
  %s2 = inlined_call_operand.vmem [shape: f32[16,1], index: 2, kind: input, shape index: {}]
  %s3 = inlined_call_operand.vmem [shape: bf16[32,80], index: 3, kind: input, shape index: {}]
  %s4 = inlined_call_operand.vmem [shape: f32[32,1], index: 4, kind: input, shape index: {}]
  %s5 = inlined_call_operand.vmem [shape: bf16[16,160], index: 5, kind: input, shape index: {}]
  %s6 = inlined_call_operand.vmem [shape: f32[16,1], index: 6, kind: input, shape index: {}]
  %s7 = inlined_call_operand.vmem [shape: bf16[8,80], index: 7, kind: input, shape index: {}]
  %s8 = inlined_call_operand.vmem [shape: f32[8,1], index: 8, kind: input, shape index: {}]
  %s9 = inlined_call_operand.hbm [shape: f32[8,256], index: 9, kind: output, shape index: {}]
  %s10 = sld [smem:[#allocation0]]
  $region46: #{tpu_custom_call.1} parent=0
    _
  %s12 = ssub.s32 1, %s10
  %s13 = scalar_select 0, %s12, %s10
  $region1: #{tpu_custom_call.1} parent=0
    #allocation4 [shape = 'u8[8192]{0}', space=vmem, size = 0x2000, scoped, tag = 'output window, operand 0, single buffered']
    #allocation5 [shape = 's32[1]{0}', space=sflag, size = 0x4, scoped, tag = 'scoped memory for tpu_custom_call.1']
    %14 = vsyncpa [#allocation5], 0
    // Predicated region
    $region2: #{tpu_custom_call.1} parent=1 // pred_check
      _
    $region3: #{tpu_custom_call.1} parent=1 // pred_check_branch
      %16 = sbr.rel (0) target = $region5
    $region4: #{tpu_custom_call.1} parent=1 // pred_region
      _
    $region5: #{tpu_custom_call.1} parent=1 // pred_fallthru
      _
    // Predicated region
    $region6: #{tpu_custom_call.1} parent=1 // pred_check
      _
    $region7: #{tpu_custom_call.1} parent=1 // pred_check_branch
      %18 = sbr.rel (0) target = $region9
    $region8: #{tpu_custom_call.1} parent=1 // pred_region
      _
    $region9: #{tpu_custom_call.1} parent=1 // pred_fallthru
      _
    // Predicated region
    $region10: #{tpu_custom_call.1} parent=1 // pred_check
      _
    $region11: #{tpu_custom_call.1} parent=1 // pred_check_branch
      %20 = sbr.rel (0) target = $region13
    $region12: #{tpu_custom_call.1} parent=1 // pred_region
      _
    $region13: #{tpu_custom_call.1} parent=1 // pred_fallthru
      _
    // Predicated region
    $region14: #{tpu_custom_call.1} parent=1 // pred_check
      _
    $region15: #{tpu_custom_call.1} parent=1 // pred_check_branch
      %22 = sbr.rel (0) target = $region17
    $region16: #{tpu_custom_call.1} parent=1 // pred_region
      _
    $region17: #{tpu_custom_call.1} parent=1 // pred_fallthru
      _
    // Predicated region
    $region18: #{tpu_custom_call.1} parent=1 // pred_check
      _
    $region19: #{tpu_custom_call.1} parent=1 // pred_check_branch
      %24 = sbr.rel (0) target = $region21
    $region20: #{tpu_custom_call.1} parent=1 // pred_region
      _
    $region21: #{tpu_custom_call.1} parent=1 // pred_fallthru
      _
    // Predicated region
    $region22: #{tpu_custom_call.1} parent=1 // pred_check
      _
    $region23: #{tpu_custom_call.1} parent=1 // pred_check_branch
      %26 = sbr.rel (0) target = $region25
    $region24: #{tpu_custom_call.1} parent=1 // pred_region
      _
    $region25: #{tpu_custom_call.1} parent=1 // pred_fallthru
      _
    // Predicated region
    $region26: #{tpu_custom_call.1} parent=1 // pred_check
      _
    $region27: #{tpu_custom_call.1} parent=1 // pred_check_branch
      %28 = sbr.rel (0) target = $region29
    $region28: #{tpu_custom_call.1} parent=1 // pred_region
      _
    $region29: #{tpu_custom_call.1} parent=1 // pred_fallthru
      _
    // Predicated region
    $region30: #{tpu_custom_call.1} parent=1 // pred_check
      _
    $region31: #{tpu_custom_call.1} parent=1 // pred_check_branch
      %30 = sbr.rel (0) target = $region33
    $region32: #{tpu_custom_call.1} parent=1 // pred_region
      _
    $region33: #{tpu_custom_call.1} parent=1 // pred_fallthru
      _
    // Predicated region
    $region34: #{tpu_custom_call.1} parent=1 // pred_check
      _
    $region35: #{tpu_custom_call.1} parent=1 // pred_check_branch
      %32 = sbr.rel (0) target = $region37
    $region36: #{tpu_custom_call.1} parent=1 // pred_region
      _
    $region37: #{tpu_custom_call.1} parent=1 // pred_fallthru
      _
    %v34 = vlaneseq
    %v35 = vand.u32 %v34, 127
    %v36 = vadd.s32 %v35, 128
    %vm37 = vcmp.lt.s32.totalorder %v35, 0
    %v38 = vsub.s32 0, %v35
    %v39 = vsel %vm37, %v38, %v35
    %v40 = vshrl.u32 %v39, 6
    %v41 = vand.u32 %v39, 63
    %v42 = vsub.s32 0, %v41
    %v43 = vsel %vm37, %v42, %v41
    %vm44 = vcmp.lt.s32.totalorder %v36, 0
    %v45 = vsub.s32 0, %v36
    %v46 = vsel %vm44, %v45, %v36
    %v47 = vshrl.u32 %v46, 6
    %v48 = vand.u32 %v46, 63
    %v49 = vsub.s32 0, %v48
    %v50 = vsel %vm44, %v49, %v48
    %vm51 = vcmp.ne.s32.totalorder %v43, 0
    %vm52 = vcmp.ne.s32.totalorder %v50, 0
    %vm53 = vcmp.lt.s32.totalorder %v43, 0
    %vm54 = vcmp.lt.s32.totalorder %v50, 0
    %vm55 = vmand %vm53, %vm51
    %vm56 = vmand %vm54, %vm52
    %v57 = vadd.s32 %v43, 64
    %v58 = vadd.s32 %v50, 64
    %v59 = vsel %vm55, %v57, %v43
    %v60 = vsel %vm56, %v58, %v50
    %v61 = vld [vmem:[%s0] sm:$0xff]
    %v62 = vld [vmem:[%s0 + $0x8] sm:$0xff]
    %v63 = vld [vmem:[%s0 + $0x10] sm:$0xff]
    %v64 = vld [vmem:[%s0 + $0x18] sm:$0xff]
    %65 = vrot.lane.b32.xlu0 %v61, 2
    %v66 = vpop.permute.xlu0 %65
    %67 = vrot.lane.b32.xlu0 %v63, 2
    %v68 = vpop.permute.xlu0 %67
    %69 = vrot.lane.b32.xlu0 %v62, 2
    %v70 = vpop.permute.xlu0 %69
    %71 = vrot.lane.b32.xlu0 %v64, 2
    %v72 = vpop.permute.xlu0 %71
    %vm73 = vcmp.lt.s32.totalorder %v35, 2
    %v74 = vsel %vm73, %v66, %v70
    %v75 = vsel %vm73, %v68, %v72
    %v76 = vsel %vm73, %v70, %v66
    %v77 = vsel %vm73, %v72, %v68
    %vm78 = vcmp.ge.s32.totalorder %v59, 2
    %vm79 = vcmp.ge.s32.totalorder %v60, 2
    %vm80 = vcmp.lt.s32.totalorder %v59, 66
    %vm81 = vcmp.lt.s32.totalorder %v60, 66
    %vm82 = vmand %vm78, %vm80
    %vm83 = vmand %vm79, %vm81
    %v84 = vsel %vm82, 1, 0
    %v85 = vsel %vm83, 1, 0
    %vm86 = vcmp.eq.s32.totalorder %v84, 1
    %vm87 = vcmp.eq.s32.totalorder %v85, 1
    %v88 = vsel %vm86, %v76, 0.0
    %v89 = vsel %vm87, %v74, 0.0
    %v90 = vsel %vm86, %v77, 0.0
    %v91 = vsel %vm87, %v75, 0.0
    %v92 = vpack.c.bf16 %v89, %v88
    %v93 = vpack.c.bf16 %v91, %v90
    %94 = vst [vmem:[#allocation2] sm:$0xff] %v92
    %95 = vst [vmem:[#allocation2 + $0x8] sm:$0xff] %v93
    %96 = vrot.lane.b32.xlu0 %v61, 1
    %v97 = vpop.permute.xlu0 %96
    %98 = vrot.lane.b32.xlu0 %v63, 1
    %v99 = vpop.permute.xlu0 %98
    %100 = vrot.lane.b32.xlu0 %v62, 1
    %v101 = vpop.permute.xlu0 %100
    %102 = vrot.lane.b32.xlu0 %v64, 1
    %v103 = vpop.permute.xlu0 %102
    %vm104 = vcmp.lt.s32.totalorder %v35, 1
    %v105 = vsel %vm104, %v97, %v101
    %v106 = vsel %vm104, %v99, %v103
    %v107 = vsel %vm104, %v101, %v97
    %v108 = vsel %vm104, %v103, %v99
    %vm109 = vcmp.ge.s32.totalorder %v59, 1
    %vm110 = vcmp.ge.s32.totalorder %v60, 1
    %vm111 = vcmp.lt.s32.totalorder %v59, 65
    %vm112 = vcmp.lt.s32.totalorder %v60, 65
    %vm113 = vmand %vm109, %vm111
    %vm114 = vmand %vm110, %vm112
    %v115 = vsel %vm113, 1, 0
    %v116 = vsel %vm114, 1, 0
    %vm117 = vcmp.eq.s32.totalorder %v115, 1
    %vm118 = vcmp.eq.s32.totalorder %v116, 1
    %v119 = vsel %vm117, %v107, 0.0
    %v120 = vsel %vm118, %v105, 0.0
    %v121 = vsel %vm117, %v108, 0.0
    %v122 = vsel %vm118, %v106, 0.0
    %v123 = vpack.c.bf16 %v120, %v119
    %v124 = vpack.c.bf16 %v122, %v121
    %125 = vst [vmem:[#allocation2 + $0x10] sm:$0xff] %v123
    %126 = vst [vmem:[#allocation2 + $0x18] sm:$0xff] %v124
    %v127 = vpack.c.bf16 %v62, %v61
    %v128 = vpack.c.bf16 %v64, %v63
    %129 = vst [vmem:[#allocation2 + $0x20] sm:$0xff] %v127
    %130 = vst [vmem:[#allocation2 + $0x28] sm:$0xff] %v128
    %131 = vrot.lane.b32.xlu0 %v61, 127
    %v132 = vpop.permute.xlu0 %131
    %133 = vrot.lane.b32.xlu0 %v63, 127
    %v134 = vpop.permute.xlu0 %133
    %135 = vrot.lane.b32.xlu0 %v62, 127
    %v136 = vpop.permute.xlu0 %135
    %137 = vrot.lane.b32.xlu0 %v64, 127
    %v138 = vpop.permute.xlu0 %137
    %vm139 = vcmp.lt.s32.totalorder %v35, 127
    %v140 = vsel %vm139, %v132, %v136
    %v141 = vsel %vm139, %v134, %v138
    %v142 = vsel %vm139, %v136, %v132
    %v143 = vsel %vm139, %v138, %v134
    %vm144 = vcmp.ge.s32.totalorder %v59, 4294967295
    %vm145 = vcmp.ge.s32.totalorder %v60, 4294967295
    %vm146 = vcmp.lt.s32.totalorder %v59, 63
    %vm147 = vcmp.lt.s32.totalorder %v60, 63
    %vm148 = vmand %vm144, %vm146
    %vm149 = vmand %vm145, %vm147
    %v150 = vsel %vm148, 1, 0
    %v151 = vsel %vm149, 1, 0
    %vm152 = vcmp.eq.s32.totalorder %v150, 1
    %vm153 = vcmp.eq.s32.totalorder %v151, 1
    %v154 = vsel %vm152, %v140, 0.0
    %v155 = vsel %vm153, %v142, 0.0
    %v156 = vsel %vm152, %v141, 0.0
    %v157 = vsel %vm153, %v143, 0.0
    %v158 = vpack.c.bf16 %v155, %v154
    %v159 = vpack.c.bf16 %v157, %v156
    %160 = vst [vmem:[#allocation2 + $0x30] sm:$0xff] %v158
    %161 = vst [vmem:[#allocation2 + $0x38] sm:$0xff] %v159
    %162 = vrot.lane.b32.xlu0 %v61, 126
    %v163 = vpop.permute.xlu0 %162
    %164 = vrot.lane.b32.xlu0 %v63, 126
    %v165 = vpop.permute.xlu0 %164
    %166 = vrot.lane.b32.xlu0 %v62, 126
    %v167 = vpop.permute.xlu0 %166
    %168 = vrot.lane.b32.xlu0 %v64, 126
    %v169 = vpop.permute.xlu0 %168
    %vm170 = vcmp.lt.s32.totalorder %v35, 126
    %v171 = vsel %vm170, %v163, %v167
    %v172 = vsel %vm170, %v165, %v169
    %v173 = vsel %vm170, %v167, %v163
    %v174 = vsel %vm170, %v169, %v165
    %vm175 = vcmp.ge.s32.totalorder %v59, 4294967294
    %vm176 = vcmp.ge.s32.totalorder %v60, 4294967294
    %vm177 = vcmp.lt.s32.totalorder %v59, 62
    %vm178 = vcmp.lt.s32.totalorder %v60, 62
    %vm179 = vmand %vm175, %vm177
    %vm180 = vmand %vm176, %vm178
    %v181 = vsel %vm179, 1, 0
    %v182 = vsel %vm180, 1, 0
    %vm183 = vcmp.eq.s32.totalorder %v181, 1
    %vm184 = vcmp.eq.s32.totalorder %v182, 1
    %v185 = vsel %vm183, %v171, 0.0
    %v186 = vsel %vm184, %v173, 0.0
    %v187 = vsel %vm183, %v172, 0.0
    %v188 = vsel %vm184, %v174, 0.0
    %v189 = vpack.c.bf16 %v186, %v185
    %v190 = vpack.c.bf16 %v188, %v187
    %191 = vst [vmem:[#allocation2 + $0x40] sm:$0xff] %v189
    %192 = vst [vmem:[#allocation2 + $0x48] sm:$0xff] %v190
    %v193 = vld [vmem:[%s1] sm:$0xf]
    %v194 = vld [vmem:[%s1 + $0x4] sm:$0xf]
    %v195 = vld [vmem:[#allocation2] sm:$0xff]
    %v196 = vld [vmem:[#allocation2 + $0x8] sm:$0xff]
    %v197 = vld [vmem:[#allocation2 + $0x10] sm:$0xff]
    %v198 = vld [vmem:[#allocation2 + $0x18] sm:$0xff]
    %v199 = vld [vmem:[#allocation2 + $0x20] sm:$0xff]
    %v200 = vld [vmem:[#allocation2 + $0x28] sm:$0xff]
    %v201 = vld [vmem:[#allocation2 + $0x30] sm:$0xff]
    %v202 = vld [vmem:[#allocation2 + $0x38] sm:$0xff]
    %v203 = vld [vmem:[#allocation2 + $0x40] sm:$0xff]
    %v204 = vld [vmem:[#allocation2 + $0x48] sm:$0xff]
    %v205 = vld [vmem:[%s2] sm:$0xff]
    %v206 = vld [vmem:[%s2 + $0x8] sm:$0xff]
    %208 = vset.pattern.permute.xlu0 0
    %209 = vperm.xlu0 %208, %v205
    %v210 = vpop.permute.xlu0 %209
    %213 = vset.pattern.permute.xlu0 0
    %214 = vperm.xlu0 %213, %v206
    %v215 = vpop.permute.xlu0 %214
    %v219 = vunpack.c.l.b16 %v193
    %v220 = vunpack.c.l.b16 %v194
    %v221 = vpack.c.b16 %v220, %v219
    %v232 = vunpack.c.l.b16 %v195
    %v233 = vunpack.c.h.b16 %v195
    %v234 = vunpack.c.l.b16 %v196
    %v235 = vunpack.c.h.b16 %v196
    %v236 = vunpack.c.l.b16 %v197
    %v237 = vunpack.c.h.b16 %v197
    %v238 = vunpack.c.l.b16 %v198
    %v239 = vunpack.c.h.b16 %v198
    %v240 = vunpack.c.l.b16 %v199
    %v241 = vunpack.c.h.b16 %v199
    %v242 = vunpack.c.l.b16 %v200
    %v243 = vunpack.c.h.b16 %v200
    %v244 = vunpack.c.l.b16 %v201
    %v245 = vunpack.c.h.b16 %v201
    %v246 = vunpack.c.l.b16 %v202
    %v247 = vunpack.c.h.b16 %v202
    %v248 = vunpack.c.l.b16 %v203
    %v249 = vunpack.c.h.b16 %v203
    %v250 = vunpack.c.l.b16 %v204
    %v251 = vunpack.c.h.b16 %v204
    %v252 = vpack.c.b16 %v234, %v232
    %v253 = vpack.c.b16 %v235, %v233
    %v254 = vpack.c.b16 %v238, %v236
    %v255 = vpack.c.b16 %v239, %v237
    %v256 = vpack.c.b16 %v242, %v240
    %v257 = vpack.c.b16 %v243, %v241
    %v258 = vpack.c.b16 %v246, %v244
    %v259 = vpack.c.b16 %v247, %v245
    %v260 = vpack.c.b16 %v250, %v248
    %v261 = vpack.c.b16 %v251, %v249
    %vm272 = vcmask 654336
    %v274 = vsel %vm272, %v221, 0
    %276 = vmatpush.bf16.msra.mxu0 0
    %277 = vmatpush.bf16.msra.mxu0 0
    %278 = vmatpush.bf16.msra.mxu0 0
    %279 = vmatpush.bf16.msra.mxu0 %v260
    %280 = vmatpush.bf16.msra.mxu0 %v258
    %281 = vmatpush.bf16.msra.mxu0 %v256
    %282 = vmatpush.bf16.msra.mxu0 %v254
    %283 = vmatpush.bf16.msra.mxu0 %v252
    %284 = vmatmul.bf16.gmra.mxu0 %v274
    %v285 = vpop.f32.mrf.mxu0
    %v286 = vadd.f32 %v210, %v285
    %v287 = vpop.f32.mrf.mxu0
    %v288 = vadd.f32 %v215, %v287
    %289 = vdwg.mxu0
    %290 = vmatpush.bf16.msra.mxu0 0
    %291 = vmatpush.bf16.msra.mxu0 0
    %292 = vmatpush.bf16.msra.mxu0 0
    %293 = vmatpush.bf16.msra.mxu0 %v261
    %294 = vmatpush.bf16.msra.mxu0 %v259
    %295 = vmatpush.bf16.msra.mxu0 %v257
    %296 = vmatpush.bf16.msra.mxu0 %v255
    %297 = vmatpush.bf16.msra.mxu0 %v253
    %298 = vmatmul.bf16.gmra.mxu0 %v274
    %v299 = vpop.f32.mrf.mxu0
    %v300 = vadd.f32 %v210, %v299
    %v301 = vpop.f32.mrf.mxu0
    %v302 = vadd.f32 %v215, %v301
    %303 = vdwg.mxu0
    %v304 = vmax.f32 %v286, 0.0
    %v305 = vmax.f32 %v300, 0.0
    %v306 = vmax.f32 %v288, 0.0
    %v307 = vmax.f32 %v302, 0.0
    %308 = vst [vmem:[#allocation3] sm:$0xff] %v304
    %309 = vst [vmem:[#allocation3 + $0x8] sm:$0xff] %v305
    %310 = vst [vmem:[#allocation3 + $0x10] sm:$0xff] %v306
    %311 = vst [vmem:[#allocation3 + $0x18] sm:$0xff] %v307
    %v312 = vld [vmem:[#allocation3] sm:$0xff]
    %v313 = vld [vmem:[#allocation3 + $0x8] sm:$0xff]
    %v314 = vld [vmem:[#allocation3 + $0x10] sm:$0xff]
    %v315 = vld [vmem:[#allocation3 + $0x18] sm:$0xff]
    %316 = vrot.lane.b32.xlu0 %v312, 2
    %v317 = vpop.permute.xlu0 %316
    %318 = vrot.lane.b32.xlu0 %v314, 2
    %v319 = vpop.permute.xlu0 %318
    %320 = vrot.lane.b32.xlu0 %v313, 2
    %v321 = vpop.permute.xlu0 %320
    %322 = vrot.lane.b32.xlu0 %v315, 2
    %v323 = vpop.permute.xlu0 %322
    %v324 = vsel %vm73, %v317, %v321
    %v325 = vsel %vm73, %v319, %v323
    %v326 = vsel %vm73, %v321, %v317
    %v327 = vsel %vm73, %v323, %v319
    %v328 = vsel %vm86, %v326, 0.0
    %v329 = vsel %vm87, %v324, 0.0
    %v330 = vsel %vm86, %v327, 0.0
    %v331 = vsel %vm87, %v325, 0.0
    %v332 = vpack.c.bf16 %v329, %v328
    %v333 = vpack.c.bf16 %v331, %v330
    %334 = vst [vmem:[#allocation2] sm:$0xff] %v332
    %335 = vst [vmem:[#allocation2 + $0x8] sm:$0xff] %v333
    %336 = vrot.lane.b32.xlu0 %v312, 1
    %v337 = vpop.permute.xlu0 %336
    %338 = vrot.lane.b32.xlu0 %v314, 1
    %v339 = vpop.permute.xlu0 %338
    %340 = vrot.lane.b32.xlu0 %v313, 1
    %v341 = vpop.permute.xlu0 %340
    %342 = vrot.lane.b32.xlu0 %v315, 1
    %v343 = vpop.permute.xlu0 %342
    %v344 = vsel %vm104, %v337, %v341
    %v345 = vsel %vm104, %v339, %v343
    %v346 = vsel %vm104, %v341, %v337
    %v347 = vsel %vm104, %v343, %v339
    %v348 = vsel %vm117, %v346, 0.0
    %v349 = vsel %vm118, %v344, 0.0
    %v350 = vsel %vm117, %v347, 0.0
    %v351 = vsel %vm118, %v345, 0.0
    %v352 = vpack.c.bf16 %v349, %v348
    %v353 = vpack.c.bf16 %v351, %v350
    %354 = vst [vmem:[#allocation2 + $0x10] sm:$0xff] %v352
    %355 = vst [vmem:[#allocation2 + $0x18] sm:$0xff] %v353
    %v356 = vpack.c.bf16 %v313, %v312
    %v357 = vpack.c.bf16 %v315, %v314
    %358 = vst [vmem:[#allocation2 + $0x20] sm:$0xff] %v356
    %359 = vst [vmem:[#allocation2 + $0x28] sm:$0xff] %v357
    %360 = vrot.lane.b32.xlu0 %v312, 127
    %v361 = vpop.permute.xlu0 %360
    %362 = vrot.lane.b32.xlu0 %v314, 127
    %v363 = vpop.permute.xlu0 %362
    %364 = vrot.lane.b32.xlu0 %v313, 127
    %v365 = vpop.permute.xlu0 %364
    %366 = vrot.lane.b32.xlu0 %v315, 127
    %v367 = vpop.permute.xlu0 %366
    %v368 = vsel %vm139, %v361, %v365
    %v369 = vsel %vm139, %v363, %v367
    %v370 = vsel %vm139, %v365, %v361
    %v371 = vsel %vm139, %v367, %v363
    %v372 = vsel %vm152, %v368, 0.0
    %v373 = vsel %vm153, %v370, 0.0
    %v374 = vsel %vm152, %v369, 0.0
    %v375 = vsel %vm153, %v371, 0.0
    %v376 = vpack.c.bf16 %v373, %v372
    %v377 = vpack.c.bf16 %v375, %v374
    %378 = vst [vmem:[#allocation2 + $0x30] sm:$0xff] %v376
    %379 = vst [vmem:[#allocation2 + $0x38] sm:$0xff] %v377
    %380 = vrot.lane.b32.xlu0 %v312, 126
    %v381 = vpop.permute.xlu0 %380
    %382 = vrot.lane.b32.xlu0 %v314, 126
    %v383 = vpop.permute.xlu0 %382
    %384 = vrot.lane.b32.xlu0 %v313, 126
    %v385 = vpop.permute.xlu0 %384
    %386 = vrot.lane.b32.xlu0 %v315, 126
    %v387 = vpop.permute.xlu0 %386
    %v388 = vsel %vm170, %v381, %v385
    %v389 = vsel %vm170, %v383, %v387
    %v390 = vsel %vm170, %v385, %v381
    %v391 = vsel %vm170, %v387, %v383
    %v392 = vsel %vm183, %v388, 0.0
    %v393 = vsel %vm184, %v390, 0.0
    %v394 = vsel %vm183, %v389, 0.0
    %v395 = vsel %vm184, %v391, 0.0
    %v396 = vpack.c.bf16 %v393, %v392
    %v397 = vpack.c.bf16 %v395, %v394
    %398 = vst [vmem:[#allocation2 + $0x40] sm:$0xff] %v396
    %399 = vst [vmem:[#allocation2 + $0x48] sm:$0xff] %v397
    %v400 = vld [vmem:[%s3] sm:$0xf]
    %v401 = vld [vmem:[%s3 + $0x4] sm:$0xf]
    %v402 = vld [vmem:[%s3 + $0x8] sm:$0xf]
    %v403 = vld [vmem:[%s3 + $0xc] sm:$0xf]
    %v404 = vld [vmem:[#allocation2] sm:$0xff]
    %v405 = vld [vmem:[#allocation2 + $0x8] sm:$0xff]
    %v406 = vld [vmem:[#allocation2 + $0x10] sm:$0xff]
    %v407 = vld [vmem:[#allocation2 + $0x18] sm:$0xff]
    %v408 = vld [vmem:[#allocation2 + $0x20] sm:$0xff]
    %v409 = vld [vmem:[#allocation2 + $0x28] sm:$0xff]
    %v410 = vld [vmem:[#allocation2 + $0x30] sm:$0xff]
    %v411 = vld [vmem:[#allocation2 + $0x38] sm:$0xff]
    %v412 = vld [vmem:[#allocation2 + $0x40] sm:$0xff]
    %v413 = vld [vmem:[#allocation2 + $0x48] sm:$0xff]
    %v414 = vld [vmem:[%s4] sm:$0xff]
    %v415 = vld [vmem:[%s4 + $0x8] sm:$0xff]
    %v416 = vld [vmem:[%s4 + $0x10] sm:$0xff]
    %v417 = vld [vmem:[%s4 + $0x18] sm:$0xff]
    %419 = vset.pattern.permute.xlu0 0
    %420 = vperm.xlu0 %419, %v414
    %v421 = vpop.permute.xlu0 %420
    %424 = vset.pattern.permute.xlu0 0
    %425 = vperm.xlu0 %424, %v415
    %v426 = vpop.permute.xlu0 %425
    %429 = vset.pattern.permute.xlu0 0
    %430 = vperm.xlu0 %429, %v416
    %v431 = vpop.permute.xlu0 %430
    %434 = vset.pattern.permute.xlu0 0
    %435 = vperm.xlu0 %434, %v417
    %v436 = vpop.permute.xlu0 %435
    %v442 = vunpack.c.l.b16 %v400
    %v443 = vunpack.c.l.b16 %v401
    %v444 = vunpack.c.l.b16 %v402
    %v445 = vunpack.c.l.b16 %v403
    %v446 = vpack.c.b16 %v443, %v442
    %v447 = vpack.c.b16 %v445, %v444
    %v458 = vunpack.c.l.b16 %v404
    %v459 = vunpack.c.h.b16 %v404
    %v460 = vunpack.c.l.b16 %v405
    %v461 = vunpack.c.h.b16 %v405
    %v462 = vunpack.c.l.b16 %v406
    %v463 = vunpack.c.h.b16 %v406
    %v464 = vunpack.c.l.b16 %v407
    %v465 = vunpack.c.h.b16 %v407
    %v466 = vunpack.c.l.b16 %v408
    %v467 = vunpack.c.h.b16 %v408
    %v468 = vunpack.c.l.b16 %v409
    %v469 = vunpack.c.h.b16 %v409
    %v470 = vunpack.c.l.b16 %v410
    %v471 = vunpack.c.h.b16 %v410
    %v472 = vunpack.c.l.b16 %v411
    %v473 = vunpack.c.h.b16 %v411
    %v474 = vunpack.c.l.b16 %v412
    %v475 = vunpack.c.h.b16 %v412
    %v476 = vunpack.c.l.b16 %v413
    %v477 = vunpack.c.h.b16 %v413
    %v478 = vpack.c.b16 %v460, %v458
    %v479 = vpack.c.b16 %v461, %v459
    %v480 = vpack.c.b16 %v464, %v462
    %v481 = vpack.c.b16 %v465, %v463
    %v482 = vpack.c.b16 %v468, %v466
    %v483 = vpack.c.b16 %v469, %v467
    %v484 = vpack.c.b16 %v472, %v470
    %v485 = vpack.c.b16 %v473, %v471
    %v486 = vpack.c.b16 %v476, %v474
    %v487 = vpack.c.b16 %v477, %v475
    %v499 = vsel %vm272, %v446, 0
    %v502 = vsel %vm272, %v447, 0
    %504 = vmatpush.bf16.msra.mxu0 0
    %505 = vmatpush.bf16.msra.mxu0 0
    %506 = vmatpush.bf16.msra.mxu0 0
    %507 = vmatpush.bf16.msra.mxu0 %v486
    %508 = vmatpush.bf16.msra.mxu0 %v484
    %509 = vmatpush.bf16.msra.mxu0 %v482
    %510 = vmatpush.bf16.msra.mxu0 %v480
    %511 = vmatpush.bf16.msra.mxu0 %v478
    %512 = vmatmul.bf16.gmra.mxu0 %v499
    %v513 = vpop.f32.mrf.mxu0
    %v514 = vadd.f32 %v421, %v513
    %v515 = vpop.f32.mrf.mxu0
    %v516 = vadd.f32 %v426, %v515
    %517 = vmatmul.bf16.gmra.mxu0 %v502
    %v518 = vpop.f32.mrf.mxu0
    %v519 = vadd.f32 %v431, %v518
    %v520 = vpop.f32.mrf.mxu0
    %v521 = vadd.f32 %v436, %v520
    %522 = vdwg.mxu0
    %523 = vmatpush.bf16.msra.mxu0 0
    %524 = vmatpush.bf16.msra.mxu0 0
    %525 = vmatpush.bf16.msra.mxu0 0
    %526 = vmatpush.bf16.msra.mxu0 %v487
    %527 = vmatpush.bf16.msra.mxu0 %v485
    %528 = vmatpush.bf16.msra.mxu0 %v483
    %529 = vmatpush.bf16.msra.mxu0 %v481
    %530 = vmatpush.bf16.msra.mxu0 %v479
    %531 = vmatmul.bf16.gmra.mxu0 %v499
    %v532 = vpop.f32.mrf.mxu0
    %v533 = vadd.f32 %v421, %v532
    %v534 = vpop.f32.mrf.mxu0
    %v535 = vadd.f32 %v426, %v534
    %536 = vmatmul.bf16.gmra.mxu0 %v502
    %v537 = vpop.f32.mrf.mxu0
    %v538 = vadd.f32 %v431, %v537
    %v539 = vpop.f32.mrf.mxu0
    %v540 = vadd.f32 %v436, %v539
    %541 = vdwg.mxu0
    %v542 = vmax.f32 %v514, 0.0
    %v543 = vmax.f32 %v533, 0.0
    %v544 = vmax.f32 %v516, 0.0
    %v545 = vmax.f32 %v535, 0.0
    %v546 = vmax.f32 %v519, 0.0
    %v547 = vmax.f32 %v538, 0.0
    %v548 = vmax.f32 %v521, 0.0
    %v549 = vmax.f32 %v540, 0.0
    %550 = vst [vmem:[#allocation3] sm:$0xff] %v542
    %551 = vst [vmem:[#allocation3 + $0x8] sm:$0xff] %v543
    %552 = vst [vmem:[#allocation3 + $0x10] sm:$0xff] %v544
    %553 = vst [vmem:[#allocation3 + $0x18] sm:$0xff] %v545
    %554 = vst [vmem:[#allocation3 + $0x20] sm:$0xff] %v546
    %555 = vst [vmem:[#allocation3 + $0x28] sm:$0xff] %v547
    %556 = vst [vmem:[#allocation3 + $0x30] sm:$0xff] %v548
    %557 = vst [vmem:[#allocation3 + $0x38] sm:$0xff] %v549
    %v558 = vld [vmem:[#allocation3] sm:$0xff]
    %v559 = vld [vmem:[#allocation3 + $0x8] sm:$0xff]
    %v560 = vld [vmem:[#allocation3 + $0x10] sm:$0xff]
    %v561 = vld [vmem:[#allocation3 + $0x18] sm:$0xff]
    %v562 = vld [vmem:[#allocation3 + $0x20] sm:$0xff]
    %v563 = vld [vmem:[#allocation3 + $0x28] sm:$0xff]
    %v564 = vld [vmem:[#allocation3 + $0x30] sm:$0xff]
    %v565 = vld [vmem:[#allocation3 + $0x38] sm:$0xff]
    %566 = vrot.lane.b32.xlu0 %v558, 2
    %v567 = vpop.permute.xlu0 %566
    %568 = vrot.lane.b32.xlu0 %v560, 2
    %v569 = vpop.permute.xlu0 %568
    %570 = vrot.lane.b32.xlu0 %v562, 2
    %v571 = vpop.permute.xlu0 %570
    %572 = vrot.lane.b32.xlu0 %v564, 2
    %v573 = vpop.permute.xlu0 %572
    %574 = vrot.lane.b32.xlu0 %v559, 2
    %v575 = vpop.permute.xlu0 %574
    %576 = vrot.lane.b32.xlu0 %v561, 2
    %v577 = vpop.permute.xlu0 %576
    %578 = vrot.lane.b32.xlu0 %v563, 2
    %v579 = vpop.permute.xlu0 %578
    %580 = vrot.lane.b32.xlu0 %v565, 2
    %v581 = vpop.permute.xlu0 %580
    %v582 = vsel %vm73, %v567, %v575
    %v583 = vsel %vm73, %v569, %v577
    %v584 = vsel %vm73, %v571, %v579
    %v585 = vsel %vm73, %v573, %v581
    %v586 = vsel %vm73, %v575, %v567
    %v587 = vsel %vm73, %v577, %v569
    %v588 = vsel %vm73, %v579, %v571
    %v589 = vsel %vm73, %v581, %v573
    %v590 = vsel %vm86, %v586, 0.0
    %v591 = vsel %vm87, %v582, 0.0
    %v592 = vsel %vm86, %v587, 0.0
    %v593 = vsel %vm87, %v583, 0.0
    %v594 = vsel %vm86, %v588, 0.0
    %v595 = vsel %vm87, %v584, 0.0
    %v596 = vsel %vm86, %v589, 0.0
    %v597 = vsel %vm87, %v585, 0.0
    %v598 = vpack.c.bf16 %v591, %v590
    %v599 = vpack.c.bf16 %v593, %v592
    %v600 = vpack.c.bf16 %v595, %v594
    %v601 = vpack.c.bf16 %v597, %v596
    %602 = vst [vmem:[#allocation2] sm:$0xff] %v598
    %603 = vst [vmem:[#allocation2 + $0x8] sm:$0xff] %v599
    %604 = vst [vmem:[#allocation2 + $0x10] sm:$0xff] %v600
    %605 = vst [vmem:[#allocation2 + $0x18] sm:$0xff] %v601
    %606 = vrot.lane.b32.xlu0 %v558, 1
    %v607 = vpop.permute.xlu0 %606
    %608 = vrot.lane.b32.xlu0 %v560, 1
    %v609 = vpop.permute.xlu0 %608
    %610 = vrot.lane.b32.xlu0 %v562, 1
    %v611 = vpop.permute.xlu0 %610
    %612 = vrot.lane.b32.xlu0 %v564, 1
    %v613 = vpop.permute.xlu0 %612
    %614 = vrot.lane.b32.xlu0 %v559, 1
    %v615 = vpop.permute.xlu0 %614
    %616 = vrot.lane.b32.xlu0 %v561, 1
    %v617 = vpop.permute.xlu0 %616
    %618 = vrot.lane.b32.xlu0 %v563, 1
    %v619 = vpop.permute.xlu0 %618
    %620 = vrot.lane.b32.xlu0 %v565, 1
    %v621 = vpop.permute.xlu0 %620
    %v622 = vsel %vm104, %v607, %v615
    %v623 = vsel %vm104, %v609, %v617
    %v624 = vsel %vm104, %v611, %v619
    %v625 = vsel %vm104, %v613, %v621
    %v626 = vsel %vm104, %v615, %v607
    %v627 = vsel %vm104, %v617, %v609
    %v628 = vsel %vm104, %v619, %v611
    %v629 = vsel %vm104, %v621, %v613
    %v630 = vsel %vm117, %v626, 0.0
    %v631 = vsel %vm118, %v622, 0.0
    %v632 = vsel %vm117, %v627, 0.0
    %v633 = vsel %vm118, %v623, 0.0
    %v634 = vsel %vm117, %v628, 0.0
    %v635 = vsel %vm118, %v624, 0.0
    %v636 = vsel %vm117, %v629, 0.0
    %v637 = vsel %vm118, %v625, 0.0
    %v638 = vpack.c.bf16 %v631, %v630
    %v639 = vpack.c.bf16 %v633, %v632
    %v640 = vpack.c.bf16 %v635, %v634
    %v641 = vpack.c.bf16 %v637, %v636
    %642 = vst [vmem:[#allocation2 + $0x20] sm:$0xff] %v638
    %643 = vst [vmem:[#allocation2 + $0x28] sm:$0xff] %v639
    %644 = vst [vmem:[#allocation2 + $0x30] sm:$0xff] %v640
    %645 = vst [vmem:[#allocation2 + $0x38] sm:$0xff] %v641
    %v646 = vpack.c.bf16 %v559, %v558
    %v647 = vpack.c.bf16 %v561, %v560
    %v648 = vpack.c.bf16 %v563, %v562
    %v649 = vpack.c.bf16 %v565, %v564
    %650 = vst [vmem:[#allocation2 + $0x40] sm:$0xff] %v646
    %651 = vst [vmem:[#allocation2 + $0x48] sm:$0xff] %v647
    %652 = vst [vmem:[#allocation2 + $0x50] sm:$0xff] %v648
    %653 = vst [vmem:[#allocation2 + $0x58] sm:$0xff] %v649
    %654 = vrot.lane.b32.xlu0 %v558, 127
    %v655 = vpop.permute.xlu0 %654
    %656 = vrot.lane.b32.xlu0 %v560, 127
    %v657 = vpop.permute.xlu0 %656
    %658 = vrot.lane.b32.xlu0 %v562, 127
    %v659 = vpop.permute.xlu0 %658
    %660 = vrot.lane.b32.xlu0 %v564, 127
    %v661 = vpop.permute.xlu0 %660
    %662 = vrot.lane.b32.xlu0 %v559, 127
    %v663 = vpop.permute.xlu0 %662
    %664 = vrot.lane.b32.xlu0 %v561, 127
    %v665 = vpop.permute.xlu0 %664
    %666 = vrot.lane.b32.xlu0 %v563, 127
    %v667 = vpop.permute.xlu0 %666
    %668 = vrot.lane.b32.xlu0 %v565, 127
    %v669 = vpop.permute.xlu0 %668
    %v670 = vsel %vm139, %v655, %v663
    %v671 = vsel %vm139, %v657, %v665
    %v672 = vsel %vm139, %v659, %v667
    %v673 = vsel %vm139, %v661, %v669
    %v674 = vsel %vm139, %v663, %v655
    %v675 = vsel %vm139, %v665, %v657
    %v676 = vsel %vm139, %v667, %v659
    %v677 = vsel %vm139, %v669, %v661
    %v678 = vsel %vm152, %v670, 0.0
    %v679 = vsel %vm153, %v674, 0.0
    %v680 = vsel %vm152, %v671, 0.0
    %v681 = vsel %vm153, %v675, 0.0
    %v682 = vsel %vm152, %v672, 0.0
    %v683 = vsel %vm153, %v676, 0.0
    %v684 = vsel %vm152, %v673, 0.0
    %v685 = vsel %vm153, %v677, 0.0
    %v686 = vpack.c.bf16 %v679, %v678
    %v687 = vpack.c.bf16 %v681, %v680
    %v688 = vpack.c.bf16 %v683, %v682
    %v689 = vpack.c.bf16 %v685, %v684
    %690 = vst [vmem:[#allocation2 + $0x60] sm:$0xff] %v686
    %691 = vst [vmem:[#allocation2 + $0x68] sm:$0xff] %v687
    %692 = vst [vmem:[#allocation2 + $0x70] sm:$0xff] %v688
    %693 = vst [vmem:[#allocation2 + $0x78] sm:$0xff] %v689
    %694 = vrot.lane.b32.xlu0 %v558, 126
    %v695 = vpop.permute.xlu0 %694
    %696 = vrot.lane.b32.xlu0 %v560, 126
    %v697 = vpop.permute.xlu0 %696
    %698 = vrot.lane.b32.xlu0 %v562, 126
    %v699 = vpop.permute.xlu0 %698
    %700 = vrot.lane.b32.xlu0 %v564, 126
    %v701 = vpop.permute.xlu0 %700
    %702 = vrot.lane.b32.xlu0 %v559, 126
    %v703 = vpop.permute.xlu0 %702
    %704 = vrot.lane.b32.xlu0 %v561, 126
    %v705 = vpop.permute.xlu0 %704
    %706 = vrot.lane.b32.xlu0 %v563, 126
    %v707 = vpop.permute.xlu0 %706
    %708 = vrot.lane.b32.xlu0 %v565, 126
    %v709 = vpop.permute.xlu0 %708
    %v710 = vsel %vm170, %v695, %v703
    %v711 = vsel %vm170, %v697, %v705
    %v712 = vsel %vm170, %v699, %v707
    %v713 = vsel %vm170, %v701, %v709
    %v714 = vsel %vm170, %v703, %v695
    %v715 = vsel %vm170, %v705, %v697
    %v716 = vsel %vm170, %v707, %v699
    %v717 = vsel %vm170, %v709, %v701
    %v718 = vsel %vm183, %v710, 0.0
    %v719 = vsel %vm184, %v714, 0.0
    %v720 = vsel %vm183, %v711, 0.0
    %v721 = vsel %vm184, %v715, 0.0
    %v722 = vsel %vm183, %v712, 0.0
    %v723 = vsel %vm184, %v716, 0.0
    %v724 = vsel %vm183, %v713, 0.0
    %v725 = vsel %vm184, %v717, 0.0
    %v726 = vpack.c.bf16 %v719, %v718
    %v727 = vpack.c.bf16 %v721, %v720
    %v728 = vpack.c.bf16 %v723, %v722
    %v729 = vpack.c.bf16 %v725, %v724
    %730 = vst [vmem:[#allocation2 + $0x80] sm:$0xff] %v726
    %731 = vst [vmem:[#allocation2 + $0x88] sm:$0xff] %v727
    %732 = vst [vmem:[#allocation2 + $0x90] sm:$0xff] %v728
    %733 = vst [vmem:[#allocation2 + $0x98] sm:$0xff] %v729
    %v734 = vld [vmem:[%s5] sm:$0xff]
    %v735 = vld [vmem:[%s5 + $0x8] sm:$0xff]
    %v736 = vld [vmem:[#allocation2] sm:$0xff]
    %v737 = vld [vmem:[#allocation2 + $0x8] sm:$0xff]
    %v738 = vld [vmem:[#allocation2 + $0x10] sm:$0xff]
    %v739 = vld [vmem:[#allocation2 + $0x18] sm:$0xff]
    %v740 = vld [vmem:[#allocation2 + $0x20] sm:$0xff]
    %v741 = vld [vmem:[#allocation2 + $0x28] sm:$0xff]
    %v742 = vld [vmem:[#allocation2 + $0x30] sm:$0xff]
    %v743 = vld [vmem:[#allocation2 + $0x38] sm:$0xff]
    %v744 = vld [vmem:[#allocation2 + $0x40] sm:$0xff]
    %v745 = vld [vmem:[#allocation2 + $0x48] sm:$0xff]
    %v746 = vld [vmem:[#allocation2 + $0x50] sm:$0xff]
    %v747 = vld [vmem:[#allocation2 + $0x58] sm:$0xff]
    %v748 = vld [vmem:[#allocation2 + $0x60] sm:$0xff]
    %v749 = vld [vmem:[#allocation2 + $0x68] sm:$0xff]
    %v750 = vld [vmem:[#allocation2 + $0x70] sm:$0xff]
    %v751 = vld [vmem:[#allocation2 + $0x78] sm:$0xff]
    %v752 = vld [vmem:[#allocation2 + $0x80] sm:$0xff]
    %v753 = vld [vmem:[#allocation2 + $0x88] sm:$0xff]
    %v754 = vld [vmem:[#allocation2 + $0x90] sm:$0xff]
    %v755 = vld [vmem:[#allocation2 + $0x98] sm:$0xff]
    %v756 = vld [vmem:[%s6] sm:$0xff]
    %v757 = vld [vmem:[%s6 + $0x8] sm:$0xff]
    %759 = vset.pattern.permute.xlu0 0
    %760 = vperm.xlu0 %759, %v756
    %v761 = vpop.permute.xlu0 %760
    %764 = vset.pattern.permute.xlu0 0
    %765 = vperm.xlu0 %764, %v757
    %v766 = vpop.permute.xlu0 %765
    %v770 = vunpack.c.l.b16 %v734
    %v771 = vunpack.c.h.b16 %v734
    %v772 = vunpack.c.l.b16 %v735
    %v773 = vunpack.c.h.b16 %v735
    %v774 = vpack.c.b16 %v772, %v770
    %v775 = vpack.c.b16 %v773, %v771
    %v797 = vunpack.c.l.b16 %v736
    %v798 = vunpack.c.h.b16 %v736
    %v799 = vunpack.c.l.b16 %v737
    %v800 = vunpack.c.h.b16 %v737
    %v801 = vunpack.c.l.b16 %v738
    %v802 = vunpack.c.h.b16 %v738
    %v803 = vunpack.c.l.b16 %v739
    %v804 = vunpack.c.h.b16 %v739
    %v805 = vunpack.c.l.b16 %v740
    %v806 = vunpack.c.h.b16 %v740
    %v807 = vunpack.c.l.b16 %v741
    %v808 = vunpack.c.h.b16 %v741
    %v809 = vunpack.c.l.b16 %v742
    %v810 = vunpack.c.h.b16 %v742
    %v811 = vunpack.c.l.b16 %v743
    %v812 = vunpack.c.h.b16 %v743
    %v813 = vunpack.c.l.b16 %v744
    %v814 = vunpack.c.h.b16 %v744
    %v815 = vunpack.c.l.b16 %v745
    %v816 = vunpack.c.h.b16 %v745
    %v817 = vunpack.c.l.b16 %v746
    %v818 = vunpack.c.h.b16 %v746
    %v819 = vunpack.c.l.b16 %v747
    %v820 = vunpack.c.h.b16 %v747
    %v821 = vunpack.c.l.b16 %v748
    %v822 = vunpack.c.h.b16 %v748
    %v823 = vunpack.c.l.b16 %v749
    %v824 = vunpack.c.h.b16 %v749
    %v825 = vunpack.c.l.b16 %v750
    %v826 = vunpack.c.h.b16 %v750
    %v827 = vunpack.c.l.b16 %v751
    %v828 = vunpack.c.h.b16 %v751
    %v829 = vunpack.c.l.b16 %v752
    %v830 = vunpack.c.h.b16 %v752
    %v831 = vunpack.c.l.b16 %v753
    %v832 = vunpack.c.h.b16 %v753
    %v833 = vunpack.c.l.b16 %v754
    %v834 = vunpack.c.h.b16 %v754
    %v835 = vunpack.c.l.b16 %v755
    %v836 = vunpack.c.h.b16 %v755
    %v837 = vpack.c.b16 %v799, %v797
    %v838 = vpack.c.b16 %v800, %v798
    %v839 = vpack.c.b16 %v803, %v801
    %v840 = vpack.c.b16 %v804, %v802
    %v841 = vpack.c.b16 %v807, %v805
    %v842 = vpack.c.b16 %v808, %v806
    %v843 = vpack.c.b16 %v811, %v809
    %v844 = vpack.c.b16 %v812, %v810
    %v845 = vpack.c.b16 %v815, %v813
    %v846 = vpack.c.b16 %v816, %v814
    %v847 = vpack.c.b16 %v819, %v817
    %v848 = vpack.c.b16 %v820, %v818
    %v849 = vpack.c.b16 %v823, %v821
    %v850 = vpack.c.b16 %v824, %v822
    %v851 = vpack.c.b16 %v827, %v825
    %v852 = vpack.c.b16 %v828, %v826
    %v853 = vpack.c.b16 %v831, %v829
    %v854 = vpack.c.b16 %v832, %v830
    %v855 = vpack.c.b16 %v835, %v833
    %v856 = vpack.c.b16 %v836, %v834
    %vm877 = vcmask 261120
    %v879 = vsel %vm877, %v775, 0
    %881 = vmatpush.bf16.msra.mxu0 %v851
    %882 = vmatpush.bf16.msra.mxu0 %v849
    %883 = vmatpush.bf16.msra.mxu0 %v847
    %884 = vmatpush.bf16.msra.mxu0 %v845
    %885 = vmatpush.bf16.msra.mxu0 %v843
    %886 = vmatpush.bf16.msra.mxu0 %v841
    %887 = vmatpush.bf16.msra.mxu0 %v839
    %888 = vmatpush.bf16.msra.mxu0 %v837
    %889 = vmatmul.bf16.gmra.mxu0 %v774
    %v890 = vpop.f32.mrf.mxu0
    %v891 = vadd.f32 %v761, %v890
    %v892 = vpop.f32.mrf.mxu0
    %v893 = vadd.f32 %v766, %v892
    %894 = vdwg.mxu0
    %895 = vmatpush.bf16.msra.mxu0 0
    %896 = vmatpush.bf16.msra.mxu0 0
    %897 = vmatpush.bf16.msra.mxu0 0
    %898 = vmatpush.bf16.msra.mxu0 0
    %899 = vmatpush.bf16.msra.mxu0 0
    %900 = vmatpush.bf16.msra.mxu0 0
    %901 = vmatpush.bf16.msra.mxu0 %v855
    %902 = vmatpush.bf16.msra.mxu0 %v853
    %903 = vmatmul.bf16.gmra.mxu0 %v879
    %v904 = vpop.f32.mrf.mxu0
    %v905 = vadd.f32 %v891, %v904
    %v906 = vpop.f32.mrf.mxu0
    %v907 = vadd.f32 %v893, %v906
    %908 = vdwg.mxu0
    %909 = vmatpush.bf16.msra.mxu0 %v852
    %910 = vmatpush.bf16.msra.mxu0 %v850
    %911 = vmatpush.bf16.msra.mxu0 %v848
    %912 = vmatpush.bf16.msra.mxu0 %v846
    %913 = vmatpush.bf16.msra.mxu0 %v844
    %914 = vmatpush.bf16.msra.mxu0 %v842
    %915 = vmatpush.bf16.msra.mxu0 %v840
    %916 = vmatpush.bf16.msra.mxu0 %v838
    %917 = vmatmul.bf16.gmra.mxu0 %v774
    %v918 = vpop.f32.mrf.mxu0
    %v919 = vadd.f32 %v761, %v918
    %v920 = vpop.f32.mrf.mxu0
    %v921 = vadd.f32 %v766, %v920
    %922 = vdwg.mxu0
    %923 = vmatpush.bf16.msra.mxu0 0
    %924 = vmatpush.bf16.msra.mxu0 0
    %925 = vmatpush.bf16.msra.mxu0 0
    %926 = vmatpush.bf16.msra.mxu0 0
    %927 = vmatpush.bf16.msra.mxu0 0
    %928 = vmatpush.bf16.msra.mxu0 0
    %929 = vmatpush.bf16.msra.mxu0 %v856
    %930 = vmatpush.bf16.msra.mxu0 %v854
    %931 = vmatmul.bf16.gmra.mxu0 %v879
    %v932 = vpop.f32.mrf.mxu0
    %v933 = vadd.f32 %v919, %v932
    %v934 = vpop.f32.mrf.mxu0
    %v935 = vadd.f32 %v921, %v934
    %936 = vdwg.mxu0
    %v937 = vmax.f32 %v905, 0.0
    %v938 = vmax.f32 %v933, 0.0
    %v939 = vmax.f32 %v907, 0.0
    %v940 = vmax.f32 %v935, 0.0
    %941 = vst [vmem:[#allocation3] sm:$0xff] %v937
    %942 = vst [vmem:[#allocation3 + $0x8] sm:$0xff] %v938
    %943 = vst [vmem:[#allocation3 + $0x10] sm:$0xff] %v939
    %944 = vst [vmem:[#allocation3 + $0x18] sm:$0xff] %v940
    %v945 = vld [vmem:[#allocation3] sm:$0xff]
    %v946 = vld [vmem:[#allocation3 + $0x8] sm:$0xff]
    %v947 = vld [vmem:[#allocation3 + $0x10] sm:$0xff]
    %v948 = vld [vmem:[#allocation3 + $0x18] sm:$0xff]
    %949 = vrot.lane.b32.xlu0 %v945, 2
    %v950 = vpop.permute.xlu0 %949
    %951 = vrot.lane.b32.xlu0 %v947, 2
    %v952 = vpop.permute.xlu0 %951
    %953 = vrot.lane.b32.xlu0 %v946, 2
    %v954 = vpop.permute.xlu0 %953
    %955 = vrot.lane.b32.xlu0 %v948, 2
    %v956 = vpop.permute.xlu0 %955
    %v957 = vsel %vm73, %v950, %v954
    %v958 = vsel %vm73, %v952, %v956
    %v959 = vsel %vm73, %v954, %v950
    %v960 = vsel %vm73, %v956, %v952
    %v961 = vsel %vm86, %v959, 0.0
    %v962 = vsel %vm87, %v957, 0.0
    %v963 = vsel %vm86, %v960, 0.0
    %v964 = vsel %vm87, %v958, 0.0
    %v965 = vpack.c.bf16 %v962, %v961
    %v966 = vpack.c.bf16 %v964, %v963
    %967 = vst [vmem:[#allocation2] sm:$0xff] %v965
    %968 = vst [vmem:[#allocation2 + $0x8] sm:$0xff] %v966
    %969 = vrot.lane.b32.xlu0 %v945, 1
    %v970 = vpop.permute.xlu0 %969
    %971 = vrot.lane.b32.xlu0 %v947, 1
    %v972 = vpop.permute.xlu0 %971
    %973 = vrot.lane.b32.xlu0 %v946, 1
    %v974 = vpop.permute.xlu0 %973
    %975 = vrot.lane.b32.xlu0 %v948, 1
    %v976 = vpop.permute.xlu0 %975
    %v977 = vsel %vm104, %v970, %v974
    %v978 = vsel %vm104, %v972, %v976
    %v979 = vsel %vm104, %v974, %v970
    %v980 = vsel %vm104, %v976, %v972
    %v981 = vsel %vm117, %v979, 0.0
    %v982 = vsel %vm118, %v977, 0.0
    %v983 = vsel %vm117, %v980, 0.0
    %v984 = vsel %vm118, %v978, 0.0
    %v985 = vpack.c.bf16 %v982, %v981
    %v986 = vpack.c.bf16 %v984, %v983
    %987 = vst [vmem:[#allocation2 + $0x10] sm:$0xff] %v985
    %988 = vst [vmem:[#allocation2 + $0x18] sm:$0xff] %v986
    %v989 = vpack.c.bf16 %v946, %v945
    %v990 = vpack.c.bf16 %v948, %v947
    %991 = vst [vmem:[#allocation2 + $0x20] sm:$0xff] %v989
    %992 = vst [vmem:[#allocation2 + $0x28] sm:$0xff] %v990
    %993 = vrot.lane.b32.xlu0 %v945, 127
    %v994 = vpop.permute.xlu0 %993
    %995 = vrot.lane.b32.xlu0 %v947, 127
    %v996 = vpop.permute.xlu0 %995
    %997 = vrot.lane.b32.xlu0 %v946, 127
    %v998 = vpop.permute.xlu0 %997
    %999 = vrot.lane.b32.xlu0 %v948, 127
    %v1000 = vpop.permute.xlu0 %999
    %v1001 = vsel %vm139, %v994, %v998
    %v1002 = vsel %vm139, %v996, %v1000
    %v1003 = vsel %vm139, %v998, %v994
    %v1004 = vsel %vm139, %v1000, %v996
    %v1005 = vsel %vm152, %v1001, 0.0
    %v1006 = vsel %vm153, %v1003, 0.0
    %v1007 = vsel %vm152, %v1002, 0.0
    %v1008 = vsel %vm153, %v1004, 0.0
    %v1009 = vpack.c.bf16 %v1006, %v1005
    %v1010 = vpack.c.bf16 %v1008, %v1007
    %1011 = vst [vmem:[#allocation2 + $0x30] sm:$0xff] %v1009
    %1012 = vst [vmem:[#allocation2 + $0x38] sm:$0xff] %v1010
    %1013 = vrot.lane.b32.xlu0 %v945, 126
    %v1014 = vpop.permute.xlu0 %1013
    %1015 = vrot.lane.b32.xlu0 %v947, 126
    %v1016 = vpop.permute.xlu0 %1015
    %1017 = vrot.lane.b32.xlu0 %v946, 126
    %v1018 = vpop.permute.xlu0 %1017
    %1019 = vrot.lane.b32.xlu0 %v948, 126
    %v1020 = vpop.permute.xlu0 %1019
    %v1021 = vsel %vm170, %v1014, %v1018
    %v1022 = vsel %vm170, %v1016, %v1020
    %v1023 = vsel %vm170, %v1018, %v1014
    %v1024 = vsel %vm170, %v1020, %v1016
    %v1025 = vsel %vm183, %v1021, 0.0
    %v1026 = vsel %vm184, %v1023, 0.0
    %v1027 = vsel %vm183, %v1022, 0.0
    %v1028 = vsel %vm184, %v1024, 0.0
    %v1029 = vpack.c.bf16 %v1026, %v1025
    %v1030 = vpack.c.bf16 %v1028, %v1027
    %1031 = vst [vmem:[#allocation2 + $0x40] sm:$0xff] %v1029
    %1032 = vst [vmem:[#allocation2 + $0x48] sm:$0xff] %v1030
    %v1033 = vld [vmem:[%s7] sm:$0xf]
    %v1034 = vld [vmem:[#allocation2] sm:$0xff]
    %v1035 = vld [vmem:[#allocation2 + $0x8] sm:$0xff]
    %v1036 = vld [vmem:[#allocation2 + $0x10] sm:$0xff]
    %v1037 = vld [vmem:[#allocation2 + $0x18] sm:$0xff]
    %v1038 = vld [vmem:[#allocation2 + $0x20] sm:$0xff]
    %v1039 = vld [vmem:[#allocation2 + $0x28] sm:$0xff]
    %v1040 = vld [vmem:[#allocation2 + $0x30] sm:$0xff]
    %v1041 = vld [vmem:[#allocation2 + $0x38] sm:$0xff]
    %v1042 = vld [vmem:[#allocation2 + $0x40] sm:$0xff]
    %v1043 = vld [vmem:[#allocation2 + $0x48] sm:$0xff]
    %v1044 = vld [vmem:[%s8] sm:$0xff]
    %1046 = vset.pattern.permute.xlu0 0
    %1047 = vperm.xlu0 %1046, %v1044
    %v1048 = vpop.permute.xlu0 %1047
    %v1060 = vunpack.c.l.b16 %v1034
    %v1061 = vunpack.c.h.b16 %v1034
    %v1062 = vunpack.c.l.b16 %v1035
    %v1063 = vunpack.c.h.b16 %v1035
    %v1064 = vunpack.c.l.b16 %v1036
    %v1065 = vunpack.c.h.b16 %v1036
    %v1066 = vunpack.c.l.b16 %v1037
    %v1067 = vunpack.c.h.b16 %v1037
    %v1068 = vunpack.c.l.b16 %v1038
    %v1069 = vunpack.c.h.b16 %v1038
    %v1070 = vunpack.c.l.b16 %v1039
    %v1071 = vunpack.c.h.b16 %v1039
    %v1072 = vunpack.c.l.b16 %v1040
    %v1073 = vunpack.c.h.b16 %v1040
    %v1074 = vunpack.c.l.b16 %v1041
    %v1075 = vunpack.c.h.b16 %v1041
    %v1076 = vunpack.c.l.b16 %v1042
    %v1077 = vunpack.c.h.b16 %v1042
    %v1078 = vunpack.c.l.b16 %v1043
    %v1079 = vunpack.c.h.b16 %v1043
    %v1080 = vpack.c.b16 %v1062, %v1060
    %v1081 = vpack.c.b16 %v1063, %v1061
    %v1082 = vpack.c.b16 %v1066, %v1064
    %v1083 = vpack.c.b16 %v1067, %v1065
    %v1084 = vpack.c.b16 %v1070, %v1068
    %v1085 = vpack.c.b16 %v1071, %v1069
    %v1086 = vpack.c.b16 %v1074, %v1072
    %v1087 = vpack.c.b16 %v1075, %v1073
    %v1088 = vpack.c.b16 %v1078, %v1076
    %v1089 = vpack.c.b16 %v1079, %v1077
    %v1101 = vsel %vm272, %v1033, 0
    %1103 = vmatpush.bf16.msra.mxu0 0
    %1104 = vmatpush.bf16.msra.mxu0 0
    %1105 = vmatpush.bf16.msra.mxu0 0
    %1106 = vmatpush.bf16.msra.mxu0 %v1088
    %1107 = vmatpush.bf16.msra.mxu0 %v1086
    %1108 = vmatpush.bf16.msra.mxu0 %v1084
    %1109 = vmatpush.bf16.msra.mxu0 %v1082
    %1110 = vmatpush.bf16.msra.mxu0 %v1080
    %1111 = vmatmul.bf16.gmra.mxu0 %v1101
    %v1112 = vpop.f32.mrf.mxu0
    %v1113 = vadd.f32 %v1048, %v1112
    %v1114 = vpop.f32.mrf.mxu0
    %1115 = vdwg.mxu0
    %1116 = vmatpush.bf16.msra.mxu0 0
    %1117 = vmatpush.bf16.msra.mxu0 0
    %1118 = vmatpush.bf16.msra.mxu0 0
    %1119 = vmatpush.bf16.msra.mxu0 %v1089
    %1120 = vmatpush.bf16.msra.mxu0 %v1087
    %1121 = vmatpush.bf16.msra.mxu0 %v1085
    %1122 = vmatpush.bf16.msra.mxu0 %v1083
    %1123 = vmatpush.bf16.msra.mxu0 %v1081
    %1124 = vmatmul.bf16.gmra.mxu0 %v1101
    %v1125 = vpop.f32.mrf.mxu0
    %v1126 = vadd.f32 %v1048, %v1125
    %v1127 = vpop.f32.mrf.mxu0
    %1128 = vdwg.mxu0
    %v1129 = vmax.f32 %v1113, 0.0
    %v1130 = vmax.f32 %v1126, 0.0
    %1131 = vst [vmem:[#allocation4] sm:$0xff] %v1129
    %1132 = vst [vmem:[#allocation4 + $0x8] sm:$0xff] %v1130
    // Predicated region
    $region38: #{tpu_custom_call.1} parent=1 // pred_check
      _
    $region39: #{tpu_custom_call.1} parent=1 // pred_check_branch
      %1134 = sbr.rel (0) target = $region41
    $region40: #{tpu_custom_call.1} parent=1 // pred_region
      %1136 = vsyncadd [#allocation5], 0
      %s1138 = sshll.u32 [#allocation4], 4
      %s1139 = int_to_ptr.vmem [resolvable:$true] %s1138
      %s1140 = sshll.u32 %s9, 4
      %s1141 = int_to_ptr.hbm [resolvable:$true] %s1140
      %1143 = dma.vmem_to_hbm [thread:$0]  %s1139, 256, %s1141, [#allocation5]
    $region41: #{tpu_custom_call.1} parent=1 // pred_fallthru
      _
    // Predicated region
    $region42: #{tpu_custom_call.1} parent=1 // pred_check
      _
    $region43: #{tpu_custom_call.1} parent=1 // pred_check_branch
      %1145 = sbr.rel (0) target = $region45
    $region44: #{tpu_custom_call.1} parent=1 // pred_region
      %1147 = dma.done [#allocation5], 256
    $region45: #{tpu_custom_call.1} parent=1 // pred_fallthru
      _
    %1148 = vsyncpa [#allocation5], 1

</llo_original>
